<compile_context>
chip_gen: v7x
topology: tpu7x:2x2x1
jax: 0.10.0
libtpu: 0.0.40
codegen_flags: <defaults>
</compile_context>

<pallas_src>
import functools

import jax
import jax.numpy as jnp
import numpy as np
from jax import lax
from jax.experimental import pallas as pl
from jax.experimental.pallas import tpu as pltpu


def _mri_mask_kernel(x_ref, m_ref, lf_ref, rf_ref, li_ref, ri_ref, out_ref,
                     *, mxu_dtype):
    """One grid step = Bt batch images.

    x_ref  : (Bt, N, N)  real images
    m_ref  : (Bt, N, N)  k-space sampling masks
    lf_ref : (2N, N)     forward-DFT left block   [ C ; -S ]
    rf_ref : (N, 2N)     forward-DFT right block  [ C | S ]
    li_ref : (2N, 2N)    inverse-DFT left block   [[C,-S],[S,C]] / N
    ri_ref : (N, 2N)     inverse-DFT right block  [ C | S ] / N
    out_ref: (Bt*N, L)   lane-dense packed slab   [u_r|u_i|z_r|z_i|abs|pad0]
    """
    bt, n, _ = x_ref.shape
    lanes = out_ref.shape[-1]
    f32 = jnp.float32

    x = x_ref[...]
    m = m_ref[...]
    lf = lf_ref[...]
    rf = rf_ref[...]
    li = li_ref[...]
    ri = ri_ref[...]

    def left(mat, v):
        # (R, K) constant block @ (Bt, K, n) -> (Bt, R, n): one batched MXU
        # matmul (contraction K = H or 2H) with f32 accumulation.
        matb = jnp.broadcast_to(mat, (bt,) + mat.shape)
        return lax.dot_general(
            matb, v.astype(mxu_dtype),
            dimension_numbers=(((2,), (1,)), ((0,), (0,))),
            preferred_element_type=f32)

    def right(v, mat):
        # (Bt, R, K) @ (K, C) merged over batch: ONE (Bt*R, K) x (K, C) matmul.
        rows = v.shape[1]
        out = jnp.dot(v.reshape(bt * rows, v.shape[2]).astype(mxu_dtype), mat,
                      preferred_element_type=f32)
        return out.reshape(bt, rows, mat.shape[1])

    # ---- forward 2-D DFT:  Y = F X F,  F = C - iS  (torch.rfft onesided=F) --
    a_v = left(lf, x)                       # [a_r ; a_i] = [C X ; -S X]
    yh = right(a_v, rf)                     # [[a_r C | a_r S],[a_i C | a_i S]]
    y_r = yh[:, :n, :n] + yh[:, n:, n:]
    y_i = yh[:, n:, :n] - yh[:, :n, n:]

    # ---- UnderSample: both k-space channels times the sampling mask (f32) ---
    u_r = y_r * m
    u_i = y_i * m

    # ---- inverse normalized 2-D DFT:  Z = (G/N) U (G/N),  G = C + iS --------
    u_v = jnp.concatenate([u_r, u_i], axis=1)          # [u_r ; u_i]
    b_v = left(li, u_v)                                # [b_r ; b_i]
    zh = right(b_v, ri)                                # [[b_r C|b_r S],[b_i C|b_i S]]/N^2
    z_r = zh[:, :n, :n] - zh[:, n:, n:]
    z_i = zh[:, :n, n:] + zh[:, n:, :n]

    # ---- ComplexAbs ----
    z_a = jnp.sqrt(z_r * z_r + z_i * z_i)

    # ---- lane-dense packed store (one unmasked full-width slab) ----
    slab = jnp.concatenate(
        [u_r.reshape(bt * n, n), u_i.reshape(bt * n, n),
         z_r.reshape(bt * n, n), z_i.reshape(bt * n, n),
         z_a.reshape(bt * n, n)], axis=-1)
    pad = lanes - 5 * n
    if pad:
        slab = jnp.concatenate([slab, jnp.zeros((bt * n, pad), f32)], axis=-1)
    out_ref[...] = slab


def _vmem_bytes_per_step(bt, n, lanes, mxu_bytes):
    """Rough per-grid-step VMEM estimate (double-buffered I/O + live temps)."""
    f32 = 4
    n2 = 2 * n
    inputs = 2 * 2 * bt * n * n * f32                            # x + mask
    consts = 2 * (n2 * n + n * n2 + n2 * n2 + n * n2) * mxu_bytes
    output = 2 * bt * n * lanes * f32                            # packed slab
    interm = bt * (2 * n2 * n + 2 * n2 * n2 + 8 * n * n + n * lanes) * f32
    casts = bt * (2 * n2 * n + 2 * n2 * n2) * mxu_bytes
    return inputs + consts + output + interm + casts


def _choose_bt(B, n, lanes, mxu_bytes, budget, max_bt=8):
    """Largest batch tile that fits VMEM while keeping >= 2 grid steps."""
    cands = [d for d in range(1, min(B, max_bt) + 1) if B % d == 0]
    fitting = [d for d in cands
               if _vmem_bytes_per_step(d, n, lanes, mxu_bytes) <= budget]
    if not fitting:
        return 1
    multi = [d for d in fitting if B // d >= 2]     # megacore wants >= 2 steps
    return max(multi) if multi else max(fitting)


def hand_tailed_mask_forward(x, mask_pool, *, RL_seed, key,
                             mxu_dtype=jnp.bfloat16, max_bt=8):
    """JAX/Pallas equivalent of Hand_Tailed_Mask_LayerAP_RL.forward.

    x         : [B, 1, H, W] float32 (H == W)
    mask_pool : [N_masks, 1, H, W] float32 sampling masks
    RL_seed   : python float; > 0.6 transposes the masks (AP vs RL direction)
    key       : PRNG key for the torch.randperm-equivalent mask selection
    """
    B, _, H, W = x.shape
    assert H == W, "module assumes square k-space masks"
    assert H % 8 == 0, "sublane tiling assumes H % 8 == 0"
    n_masks = mask_pool.shape[0]
    assert B <= n_masks, "randperm mask selection requires batch <= mask pool"

    # ---- glue (plain JAX): randperm mask selection + optional AP/RL flip ----
    idx = jax.random.permutation(key, n_masks)[:B]
    batch_traj = mask_pool[idx]                              # [B, 1, H, W]
    if RL_seed > 0.6:
        batch_traj = jnp.transpose(batch_traj, (0, 1, 3, 2))

    # ---- DFT block matrices (deterministic "parameters") --------------------
    N = H
    kk = np.arange(N)
    ang = 2.0 * np.pi * np.outer(kk, kk) / N
    C = np.cos(ang)
    S = np.sin(ang)
    Ci, Si = C / N, S / N            # 1/(H*W) folded into the inverse factors
    lf = np.concatenate([C, -S], axis=0)                     # (2N, N)
    rf = np.concatenate([C, S], axis=1)                      # (N, 2N)
    li = np.block([[Ci, -Si], [Si, Ci]])                     # (2N, 2N)
    ri = np.concatenate([Ci, Si], axis=1)                    # (N, 2N)
    lf, rf, li, ri = (jnp.asarray(a, dtype=mxu_dtype) for a in (lf, rf, li, ri))

    x_bhw = x[:, 0].astype(jnp.float32)                      # [B, N, N]
    m_bhw = batch_traj[:, 0].astype(jnp.float32)             # [B, N, N]

    # ---- tiling / VMEM sizing ------------------------------------------------
    lanes = ((5 * N + 127) // 128) * 128     # lane-dense packed output width
    mxu_bytes = jnp.dtype(mxu_dtype).itemsize
    try:
        vmem_cap = int(pltpu.get_tpu_info().vmem_capacity_bytes)
    except Exception:
        vmem_cap = 64 * 1024 * 1024          # v7x per-TensorCore VMEM (tightest)
    bt = _choose_bt(B, N, lanes, mxu_bytes, budget=(vmem_cap * 6) // 10,
                    max_bt=max_bt)
    grid = B // bt
    vmem_limit = int(min(vmem_cap,
                         max(32 * 1024 * 1024,
                             2 * _vmem_bytes_per_step(bt, N, lanes, mxu_bytes))))

    kern = functools.partial(_mri_mask_kernel, mxu_dtype=mxu_dtype)

    img_spec = pl.BlockSpec((bt, N, N), lambda g: (g, 0, 0))
    msk_spec = pl.BlockSpec((bt, N, N), lambda g: (g, 0, 0))
    # Constant DFT blocks (constant index_map -> re-used every grid step); they
    # are small relative to the activation tiles, so default buffering is kept.
    lf_spec = pl.BlockSpec((2 * N, N), lambda g: (0, 0))
    rf_spec = pl.BlockSpec((N, 2 * N), lambda g: (0, 0))
    li_spec = pl.BlockSpec((2 * N, 2 * N), lambda g: (0, 0))
    ri_spec = pl.BlockSpec((N, 2 * N), lambda g: (0, 0))
    out_spec = pl.BlockSpec((bt * N, lanes), lambda g: (g, 0))

    packed = pl.pallas_call(
        kern,
        out_shape=jax.ShapeDtypeStruct((B * N, lanes), jnp.float32),
        grid_spec=pltpu.PrefetchScalarGridSpec(
            num_scalar_prefetch=0,
            grid=(grid,),
            in_specs=[img_spec, msk_spec, lf_spec, rf_spec, li_spec, ri_spec],
            out_specs=out_spec),
        compiler_params=pltpu.CompilerParams(
            dimension_semantics=("parallel",),
            vmem_limit_bytes=vmem_limit),
    )(x_bhw, m_bhw, lf, rf, li, ri)

    # ---- unpack the lane-dense slab back to the PyTorch NCHW outputs --------
    slab = packed.reshape(B, N, lanes)
    u_r, u_i = slab[:, :, 0:N], slab[:, :, N:2 * N]
    z_r, z_i = slab[:, :, 2 * N:3 * N], slab[:, :, 3 * N:4 * N]
    z_a = slab[:, :, 4 * N:5 * N]

    return {
        'masked_k': jnp.stack([u_r, u_i], axis=1),        # [B, 2, H, W]
        'complex_abs': z_a[:, None],                      # [B, 1, H, W]
        'zero_filling': jnp.stack([z_r, z_i], axis=1),    # [B, 2, H, W]
        'batch_trajectories': batch_traj,                 # [B, 1, H, W]
    }


if __name__ == "__main__":
    key = jax.random.PRNGKey(0)
    k_x, k_mask, k_perm = jax.random.split(key, 3)

    B, H, W = 8, 16, 16
    x = jax.random.normal(k_x, (B, 1, H, W), dtype=jnp.float32)

    # Synthetic deterministic mask pool (~33% sampling density, binary).
    # TODO(synk): real module loads fftshift'ed .mat masks; synthetic stand-in.
    n_masks = 8
    mask_pool = (jax.random.uniform(k_mask, (n_masks, 1, H, W))
                 < 0.33).astype(jnp.float32)

    def numpy_reference(out):
        xr = np.asarray(x[:, 0]).astype(np.float64)
        mr = np.asarray(out['batch_trajectories'][:, 0]).astype(np.float64)
        u = np.fft.fft2(xr) * mr
        z = np.fft.ifft2(u)
        return u, z

    # ---- f32-MXU path: tight elementwise check against numpy FFT -----------
    out32 = hand_tailed_mask_forward(x, mask_pool, RL_seed=0.7, key=k_perm,
                                     mxu_dtype=jnp.float32)
    out32 = jax.block_until_ready(out32)
    u, z = numpy_reference(out32)
    np.testing.assert_allclose(np.asarray(out32['masked_k'][:, 0]), u.real,
                               atol=1e-2, rtol=1e-3)
    np.testing.assert_allclose(np.asarray(out32['masked_k'][:, 1]), u.imag,
                               atol=1e-2, rtol=1e-3)
    np.testing.assert_allclose(np.asarray(out32['zero_filling'][:, 0]), z.real,
                               atol=1e-2, rtol=1e-3)
    np.testing.assert_allclose(np.asarray(out32['zero_filling'][:, 1]), z.imag,
                               atol=1e-2, rtol=1e-3)
    np.testing.assert_allclose(np.asarray(out32['complex_abs'][:, 0]),
                               np.abs(z), atol=1e-2, rtol=1e-3)

    # ---- default bf16-MXU path: relative Frobenius-norm check --------------
    outbf = hand_tailed_mask_forward(x, mask_pool, RL_seed=0.7, key=k_perm)
    outbf = jax.block_until_ready(outbf)
    u, z = numpy_reference(outbf)

    def rel_err(a, ref):
        a = np.asarray(a, dtype=np.float64)
        return np.linalg.norm(a - ref) / (np.linalg.norm(ref) + 1e-12)

    assert rel_err(outbf['masked_k'][:, 0], u.real) < 3e-2
    assert rel_err(outbf['masked_k'][:, 1], u.imag) < 3e-2
    assert rel_err(outbf['zero_filling'][:, 0], z.real) < 6e-2
    assert rel_err(outbf['zero_filling'][:, 1], z.imag) < 6e-2
    assert rel_err(outbf['complex_abs'][:, 0], np.abs(z)) < 6e-2

    print("KERNEL_OK")
</pallas_src>

<mosaic_0001>
module attributes {stable_mosaic.version = 11 : i64} {
  func.func @_mri_mask_kernel(%arg0: i32, %arg1: memref<4x16x16xf32, #tpu.memory_space<vmem>>, %arg2: memref<4x16x16xf32, #tpu.memory_space<vmem>>, %arg3: memref<32x16xf32, #tpu.memory_space<vmem>>, %arg4: memref<16x32xf32, #tpu.memory_space<vmem>>, %arg5: memref<32x32xf32, #tpu.memory_space<vmem>>, %arg6: memref<16x32xf32, #tpu.memory_space<vmem>>, %arg7: memref<64x128xf32, #tpu.memory_space<vmem>>) attributes {dimension_semantics = [#tpu.dimension_semantics<parallel>], iteration_bounds = array<i64: 2>, scalar_prefetch = 0 : i64, scratch_operands = 0 : i64, tpu.core_type = #tpu.core_type<tc>, window_params = [{transform_indices = @transform_0, window_bounds = array<i64: 4, 16, 16>}, {transform_indices = @transform_1, window_bounds = array<i64: 4, 16, 16>}, {pipeline_mode = #tpu.pipeline_mode<synchronous>, transform_indices = @transform_2, window_bounds = array<i64: 32, 16>}, {pipeline_mode = #tpu.pipeline_mode<synchronous>, transform_indices = @transform_3, window_bounds = array<i64: 16, 32>}, {pipeline_mode = #tpu.pipeline_mode<synchronous>, transform_indices = @transform_4, window_bounds = array<i64: 32, 32>}, {pipeline_mode = #tpu.pipeline_mode<synchronous>, transform_indices = @transform_5, window_bounds = array<i64: 16, 32>}, {transform_indices = @transform_6, window_bounds = array<i64: 64, 128>}]} {
    %c0 = arith.constant 0 : index
    %c0_0 = arith.constant 0 : index
    %c0_1 = arith.constant 0 : index
    %0 = vector.load %arg1[%c0, %c0_0, %c0_1] : memref<4x16x16xf32, #tpu.memory_space<vmem>>, vector<4x16x16xf32>
    %c0_2 = arith.constant 0 : index
    %c0_3 = arith.constant 0 : index
    %c0_4 = arith.constant 0 : index
    %1 = vector.load %arg2[%c0_2, %c0_3, %c0_4] : memref<4x16x16xf32, #tpu.memory_space<vmem>>, vector<4x16x16xf32>
    %c0_5 = arith.constant 0 : index
    %c0_6 = arith.constant 0 : index
    %2 = vector.load %arg3[%c0_5, %c0_6] : memref<32x16xf32, #tpu.memory_space<vmem>>, vector<32x16xf32>
    %c0_7 = arith.constant 0 : index
    %c0_8 = arith.constant 0 : index
    %3 = vector.load %arg4[%c0_7, %c0_8] : memref<16x32xf32, #tpu.memory_space<vmem>>, vector<16x32xf32>
    %c0_9 = arith.constant 0 : index
    %c0_10 = arith.constant 0 : index
    %4 = vector.load %arg5[%c0_9, %c0_10] : memref<32x32xf32, #tpu.memory_space<vmem>>, vector<32x32xf32>
    %c0_11 = arith.constant 0 : index
    %c0_12 = arith.constant 0 : index
    %5 = vector.load %arg6[%c0_11, %c0_12] : memref<16x32xf32, #tpu.memory_space<vmem>>, vector<16x32xf32>
    %6 = vector.shape_cast %2 : vector<32x16xf32> to vector<1x32x16xf32>
    %7 = vector.broadcast %6 : vector<1x32x16xf32> to vector<4x32x16xf32>
    %cst = arith.constant dense<0.000000e+00> : vector<4x32x16xf32>
    %8 = tpu.matmul %7, %0, %cst {dimension_numbers = #tpu.dot_dimension_numbers<[2], [1], [1], [2], [0, 0, 0, 1, 1, 2], [0], [0]>} : vector<4x32x16xf32>, vector<4x16x16xf32>, vector<4x32x16xf32> -> vector<4x32x16xf32>
    %9 = vector.shape_cast %8 : vector<4x32x16xf32> to vector<128x16xf32>
    %cst_13 = arith.constant dense<0.000000e+00> : vector<128x32xf32>
    %10 = tpu.matmul %9, %3, %cst_13 {dimension_numbers = #tpu.dot_dimension_numbers<[1], [0], [0], [1], [0, 0, 1, 1], [], []>} : vector<128x16xf32>, vector<16x32xf32>, vector<128x32xf32> -> vector<128x32xf32>
    %11 = vector.shape_cast %10 : vector<128x32xf32> to vector<4x32x32xf32>
    %12 = vector.extract_strided_slice %11 {offsets = [0, 0, 0], sizes = [4, 16, 16], strides = [1, 1, 1]} : vector<4x32x32xf32> to vector<4x16x16xf32>
    %13 = vector.extract_strided_slice %11 {offsets = [0, 16, 16], sizes = [4, 16, 16], strides = [1, 1, 1]} : vector<4x32x32xf32> to vector<4x16x16xf32>
    %14 = arith.addf %12, %13 : vector<4x16x16xf32>
    %15 = vector.extract_strided_slice %11 {offsets = [0, 16, 0], sizes = [4, 16, 16], strides = [1, 1, 1]} : vector<4x32x32xf32> to vector<4x16x16xf32>
    %16 = vector.extract_strided_slice %11 {offsets = [0, 0, 16], sizes = [4, 16, 16], strides = [1, 1, 1]} : vector<4x32x32xf32> to vector<4x16x16xf32>
    %17 = arith.subf %15, %16 : vector<4x16x16xf32>
    %18 = arith.mulf %14, %1 : vector<4x16x16xf32>
    %19 = arith.mulf %17, %1 : vector<4x16x16xf32>
    %20 = tpu.concatenate %18, %19 in 1 : vector<4x16x16xf32>, vector<4x16x16xf32> -> vector<4x32x16xf32>
    %21 = vector.shape_cast %4 : vector<32x32xf32> to vector<1x32x32xf32>
    %22 = vector.broadcast %21 : vector<1x32x32xf32> to vector<4x32x32xf32>
    %cst_14 = arith.constant dense<0.000000e+00> : vector<4x32x16xf32>
    %23 = tpu.matmul %22, %20, %cst_14 {dimension_numbers = #tpu.dot_dimension_numbers<[2], [1], [1], [2], [0, 0, 0, 1, 1, 2], [0], [0]>} : vector<4x32x32xf32>, vector<4x32x16xf32>, vector<4x32x16xf32> -> vector<4x32x16xf32>
    %24 = vector.shape_cast %23 : vector<4x32x16xf32> to vector<128x16xf32>
    %cst_15 = arith.constant dense<0.000000e+00> : vector<128x32xf32>
    %25 = tpu.matmul %24, %5, %cst_15 {dimension_numbers = #tpu.dot_dimension_numbers<[1], [0], [0], [1], [0, 0, 1, 1], [], []>} : vector<128x16xf32>, vector<16x32xf32>, vector<128x32xf32> -> vector<128x32xf32>
    %26 = vector.shape_cast %25 : vector<128x32xf32> to vector<4x32x32xf32>
    %27 = vector.extract_strided_slice %26 {offsets = [0, 0, 0], sizes = [4, 16, 16], strides = [1, 1, 1]} : vector<4x32x32xf32> to vector<4x16x16xf32>
    %28 = vector.extract_strided_slice %26 {offsets = [0, 16, 16], sizes = [4, 16, 16], strides = [1, 1, 1]} : vector<4x32x32xf32> to vector<4x16x16xf32>
    %29 = arith.subf %27, %28 : vector<4x16x16xf32>
    %30 = vector.extract_strided_slice %26 {offsets = [0, 0, 16], sizes = [4, 16, 16], strides = [1, 1, 1]} : vector<4x32x32xf32> to vector<4x16x16xf32>
    %31 = vector.extract_strided_slice %26 {offsets = [0, 16, 0], sizes = [4, 16, 16], strides = [1, 1, 1]} : vector<4x32x32xf32> to vector<4x16x16xf32>
    %32 = arith.addf %30, %31 : vector<4x16x16xf32>
    %33 = arith.mulf %29, %29 : vector<4x16x16xf32>
    %34 = arith.mulf %32, %32 : vector<4x16x16xf32>
    %35 = arith.addf %33, %34 : vector<4x16x16xf32>
    %36 = math.sqrt %35 : vector<4x16x16xf32>
    %37 = vector.shape_cast %18 : vector<4x16x16xf32> to vector<64x16xf32>
    %38 = vector.shape_cast %19 : vector<4x16x16xf32> to vector<64x16xf32>
    %39 = vector.shape_cast %29 : vector<4x16x16xf32> to vector<64x16xf32>
    %40 = vector.shape_cast %32 : vector<4x16x16xf32> to vector<64x16xf32>
    %41 = vector.shape_cast %36 : vector<4x16x16xf32> to vector<64x16xf32>
    %42 = tpu.concatenate %37, %38, %39, %40, %41 in 1 : vector<64x16xf32>, vector<64x16xf32>, vector<64x16xf32>, vector<64x16xf32>, vector<64x16xf32> -> vector<64x80xf32>
    %cst_16 = arith.constant 0.000000e+00 : f32
    %43 = vector.broadcast %cst_16 : f32 to vector<64x48xf32>
    %44 = tpu.concatenate %42, %43 in 1 : vector<64x80xf32>, vector<64x48xf32> -> vector<64x128xf32>
    %c0_17 = arith.constant 0 : index
    %c0_18 = arith.constant 0 : index
    %45 = vector.load %arg7[%c0_17, %c0_18] : memref<64x128xf32, #tpu.memory_space<vmem>>, vector<64x128xf32>
    tpu.vector_store %arg7[%c0_17, %c0_18], %44 {strides = array<i32>} : memref<64x128xf32, #tpu.memory_space<vmem>>, vector<64x128xf32>,
    return
  }
  func.func @transform_0(%arg0: i32) -> (i32, i32, i32) {
    %c0_i32 = arith.constant 0 : i32
    %c0_i32_0 = arith.constant 0 : i32
    %c0_i32_1 = arith.constant 0 : i32
    return %arg0, %c0_i32, %c0_i32_0 : i32, i32, i32
  }
  func.func @transform_1(%arg0: i32) -> (i32, i32, i32) {
    %c0_i32 = arith.constant 0 : i32
    %c0_i32_0 = arith.constant 0 : i32
    %c0_i32_1 = arith.constant 0 : i32
    return %arg0, %c0_i32, %c0_i32_0 : i32, i32, i32
  }
  func.func @transform_2(%arg0: i32) -> (i32, i32) {
    %c0_i32 = arith.constant 0 : i32
    %c0_i32_0 = arith.constant 0 : i32
    %c0_i32_1 = arith.constant 0 : i32
    return %c0_i32, %c0_i32_0 : i32, i32
  }
  func.func @transform_3(%arg0: i32) -> (i32, i32) {
    %c0_i32 = arith.constant 0 : i32
    %c0_i32_0 = arith.constant 0 : i32
    %c0_i32_1 = arith.constant 0 : i32
    return %c0_i32, %c0_i32_0 : i32, i32
  }
  func.func @transform_4(%arg0: i32) -> (i32, i32) {
    %c0_i32 = arith.constant 0 : i32
    %c0_i32_0 = arith.constant 0 : i32
    %c0_i32_1 = arith.constant 0 : i32
    return %c0_i32, %c0_i32_0 : i32, i32
  }
  func.func @transform_5(%arg0: i32) -> (i32, i32) {
    %c0_i32 = arith.constant 0 : i32
    %c0_i32_0 = arith.constant 0 : i32
    %c0_i32_1 = arith.constant 0 : i32
    return %c0_i32, %c0_i32_0 : i32, i32
  }
  func.func @transform_6(%arg0: i32) -> (i32, i32) {
    %c0_i32 = arith.constant 0 : i32
    %c0_i32_0 = arith.constant 0 : i32
    return %arg0, %c0_i32 : i32, i32
  }
}

</mosaic_0001>

<llo_original>
// kernel: tpu_custom_call.1
$region0: #{tpu_custom_call.1}
  #allocation0 [shape = 'u32[]', space=smem, size = 0x4, offset = 0x4, fixed_abs, tag = 'smem constant byte address 0x4 - core index']
  #allocation1 [shape = 'u32[144,128]{1,0:T(1,128)}', space=vmem, size = 0x12000, scoped, tag = 'internal scratch']
  %s0 = inlined_call_operand.hbm [shape: f32[8,16,16], index: 0, kind: input, shape index: {}]
  %s1 = inlined_call_operand.hbm [shape: f32[8,16,16], index: 1, kind: input, shape index: {}]
  %s2 = inlined_call_operand.vmem [shape: f32[32,16], index: 2, kind: input, shape index: {}]
  %s3 = inlined_call_operand.vmem [shape: f32[16,32], index: 3, kind: input, shape index: {}]
  %s4 = inlined_call_operand.vmem [shape: f32[32,32], index: 4, kind: input, shape index: {}]
  %s5 = inlined_call_operand.vmem [shape: f32[16,32], index: 5, kind: input, shape index: {}]
  %s6 = inlined_call_operand.hbm [shape: f32[128,128], index: 6, kind: output, shape index: {}]
  %s7 = sld [smem:[#allocation0]]
  $region65: #{tpu_custom_call.1} parent=0
    _
  %s9 = ssub.s32 1, %s7
  %s10 = scalar_select 0, %s9, %s7
  $region1: #{tpu_custom_call.1} parent=0
    #allocation2 [shape = 'u8[65536]{0}', space=vmem, size = 0x10000, scoped, tag = 'input window, operand 0']
    #allocation3 [shape = 's32[2]{0}', space=sflag, size = 0x8, scoped, tag = 'scoped memory for tpu_custom_call.1']
    #allocation4 [shape = 's32[2]{0}', space=sflag, size = 0x8, scoped, tag = 'scoped memory for tpu_custom_call.1']
    #allocation5 [shape = 'u8[65536]{0}', space=vmem, size = 0x10000, scoped, tag = 'input window, operand 1']
    #allocation6 [shape = 's32[2]{0}', space=sflag, size = 0x8, scoped, tag = 'scoped memory for tpu_custom_call.1']
    #allocation7 [shape = 'u8[65536]{0}', space=vmem, size = 0x10000, scoped, tag = 'output window, operand 0']
    %11 = vsyncpa [#allocation3], 0
    %s12 = scalar_lea.sflag [#allocation3], 1
    %13 = vsyncpa %s12, 0
    %14 = vsyncpa [#allocation6], 0
    %s15 = scalar_lea.sflag [#allocation6], 1
    %16 = vsyncpa %s15, 0
    %17 = vsyncpa [#allocation4], 0
    %s18 = scalar_lea.sflag [#allocation4], 1
    %19 = vsyncpa %s18, 0
    loop: start=0, step=1, limit=4
    $region2: #{tpu_custom_call.1} parent=1 // loop_pre_header
      _
    $region3: #{tpu_custom_call.1} parent=1 // loop_header
      %s21 = sphi 0, %s25
      %p22 = scmp.ge.s32.totalorder %s21, 4
      %s31 = sphi 0, %s33
      %s34 = sphi 0, %s31
      %s35 = sphi 0, %s34
      %s51 = sphi 0, %s35
      %s57 = sphi 0, %s59
      %s60 = sphi 0, %s57
      %s61 = sphi 0, %s60
      %s77 = sphi 0, %s61
      %s81 = sphi 0, %s81
      %s83 = sphi 0, %s81
      %s84 = sphi 0, %s83
      %s98 = sphi 0, %s84
      %s102 = sphi 0, %s102
      %s104 = sphi 0, %s102
      %s105 = sphi 0, %s104
      %s119 = sphi 0, %s105
      %s123 = sphi 0, %s123
      %s125 = sphi 0, %s123
      %s126 = sphi 0, %s125
      %s140 = sphi 0, %s126
      %s144 = sphi 0, %s144
      %s146 = sphi 0, %s144
      %s147 = sphi 0, %s146
      %s161 = sphi 0, %s147
      %s167 = sphi 0, %s169
      %s170 = sphi 0, %s167
      %s171 = sphi 0, %s170
      %s187 = sphi 0, %s171
    $region4: #{tpu_custom_call.1} parent=1 // loop_header_branch
      %24 = sbr.rel (%p22) target = $region8
    $region5: #{tpu_custom_call.1} parent=1 // loop_body
      %s26 = ssub.s32 %s21, 1
      %s27 = ssub.s32 %s21, 2
      %s28 = sadd.s32 %s21, 1
      %s29 = ssub.s32 %s21, %s28
      %p30 = scmp.eq.s32.totalorder %s29, 0
      %s32 = sadd.s32 %s31, 1
      %s33 = scalar_select %p30, %s31, %s32
      %p36 = pneg %p30
      %p37 = scmp.eq.s32.totalorder %s21, 1
      %p38 = por %p36, %p37
      %p39 = scmp.ne.s32.totalorder %s31, %s34
      %p40 = scmp.eq.s32.totalorder %s21, 0
      %p41 = por %p39, %p40
      %p42 = scmp.ne.s32.totalorder %s31, %s34
      %p43 = scmp.eq.s32.totalorder %s26, 1
      %p44 = por %p42, %p43
      %p45 = scmp.ne.s32.totalorder %s34, %s35
      %p46 = scmp.eq.s32.totalorder %s26, 0
      %p47 = por %p45, %p46
      %p48 = scmp.ne.s32.totalorder %s34, %s35
      %p49 = scmp.eq.s32.totalorder %s27, 1
      %p50 = por %p48, %p49
      %p52 = scmp.ne.s32.totalorder %s35, %s51
      %p53 = scmp.eq.s32.totalorder %s27, 0
      %p54 = por %p52, %p53
      %s55 = ssub.s32 %s21, %s28
      %p56 = scmp.eq.s32.totalorder %s55, 0
      %s58 = sadd.s32 %s57, 1
      %s59 = scalar_select %p56, %s57, %s58
      %p62 = pneg %p56
      %p63 = scmp.eq.s32.totalorder %s21, 1
      %p64 = por %p62, %p63
      %p65 = scmp.ne.s32.totalorder %s57, %s60
      %p66 = scmp.eq.s32.totalorder %s21, 0
      %p67 = por %p65, %p66
      %p68 = scmp.ne.s32.totalorder %s57, %s60
      %p69 = scmp.eq.s32.totalorder %s26, 1
      %p70 = por %p68, %p69
      %p71 = scmp.ne.s32.totalorder %s60, %s61
      %p72 = scmp.eq.s32.totalorder %s26, 0
      %p73 = por %p71, %p72
      %p74 = scmp.ne.s32.totalorder %s60, %s61
      %p75 = scmp.eq.s32.totalorder %s27, 1
      %p76 = por %p74, %p75
      %p78 = scmp.ne.s32.totalorder %s61, %s77
      %p79 = scmp.eq.s32.totalorder %s27, 0
      %p80 = por %p78, %p79
      %s82 = sadd.s32 %s81, 1
      %p85 = scmp.eq.s32.totalorder %s21, 1
      %p86 = scmp.ne.s32.totalorder %s81, %s83
      %p87 = scmp.eq.s32.totalorder %s21, 0
      %p88 = por %p86, %p87
      %p89 = scmp.ne.s32.totalorder %s81, %s83
      %p90 = scmp.eq.s32.totalorder %s26, 1
      %p91 = por %p89, %p90
      %p92 = scmp.ne.s32.totalorder %s83, %s84
      %p93 = scmp.eq.s32.totalorder %s26, 0
      %p94 = por %p92, %p93
      %p95 = scmp.ne.s32.totalorder %s83, %s84
      %p96 = scmp.eq.s32.totalorder %s27, 1
      %p97 = por %p95, %p96
      %p99 = scmp.ne.s32.totalorder %s84, %s98
      %p100 = scmp.eq.s32.totalorder %s27, 0
      %p101 = por %p99, %p100
      %s103 = sadd.s32 %s102, 1
      %p106 = scmp.eq.s32.totalorder %s21, 1
      %p107 = scmp.ne.s32.totalorder %s102, %s104
      %p108 = scmp.eq.s32.totalorder %s21, 0
      %p109 = por %p107, %p108
      %p110 = scmp.ne.s32.totalorder %s102, %s104
      %p111 = scmp.eq.s32.totalorder %s26, 1
      %p112 = por %p110, %p111
      %p113 = scmp.ne.s32.totalorder %s104, %s105
      %p114 = scmp.eq.s32.totalorder %s26, 0
      %p115 = por %p113, %p114
      %p116 = scmp.ne.s32.totalorder %s104, %s105
      %p117 = scmp.eq.s32.totalorder %s27, 1
      %p118 = por %p116, %p117
      %p120 = scmp.ne.s32.totalorder %s105, %s119
      %p121 = scmp.eq.s32.totalorder %s27, 0
      %p122 = por %p120, %p121
      %s124 = sadd.s32 %s123, 1
      %p127 = scmp.eq.s32.totalorder %s21, 1
      %p128 = scmp.ne.s32.totalorder %s123, %s125
      %p129 = scmp.eq.s32.totalorder %s21, 0
      %p130 = por %p128, %p129
      %p131 = scmp.ne.s32.totalorder %s123, %s125
      %p132 = scmp.eq.s32.totalorder %s26, 1
      %p133 = por %p131, %p132
      %p134 = scmp.ne.s32.totalorder %s125, %s126
      %p135 = scmp.eq.s32.totalorder %s26, 0
      %p136 = por %p134, %p135
      %p137 = scmp.ne.s32.totalorder %s125, %s126
      %p138 = scmp.eq.s32.totalorder %s27, 1
      %p139 = por %p137, %p138
      %p141 = scmp.ne.s32.totalorder %s126, %s140
      %p142 = scmp.eq.s32.totalorder %s27, 0
      %p143 = por %p141, %p142
      %s145 = sadd.s32 %s144, 1
      %p148 = scmp.eq.s32.totalorder %s21, 1
      %p149 = scmp.ne.s32.totalorder %s144, %s146
      %p150 = scmp.eq.s32.totalorder %s21, 0
      %p151 = por %p149, %p150
      %p152 = scmp.ne.s32.totalorder %s144, %s146
      %p153 = scmp.eq.s32.totalorder %s26, 1
      %p154 = por %p152, %p153
      %p155 = scmp.ne.s32.totalorder %s146, %s147
      %p156 = scmp.eq.s32.totalorder %s26, 0
      %p157 = por %p155, %p156
      %p158 = scmp.ne.s32.totalorder %s146, %s147
      %p159 = scmp.eq.s32.totalorder %s27, 1
      %p160 = por %p158, %p159
      %p162 = scmp.ne.s32.totalorder %s147, %s161
      %p163 = scmp.eq.s32.totalorder %s27, 0
      %p164 = por %p162, %p163
      %s165 = ssub.s32 %s21, %s28
      %p166 = scmp.eq.s32.totalorder %s165, 0
      %s168 = sadd.s32 %s167, 1
      %s169 = scalar_select %p166, %s167, %s168
      %p172 = pneg %p166
      %p173 = scmp.eq.s32.totalorder %s21, 1
      %p174 = por %p172, %p173
      %p175 = scmp.ne.s32.totalorder %s167, %s170
      %p176 = scmp.eq.s32.totalorder %s21, 0
      %p177 = por %p175, %p176
      %p178 = scmp.ne.s32.totalorder %s167, %s170
      %p179 = scmp.eq.s32.totalorder %s26, 1
      %p180 = por %p178, %p179
      %p181 = scmp.ne.s32.totalorder %s170, %s171
      %p182 = scmp.eq.s32.totalorder %s26, 0
      %p183 = por %p181, %p182
      %p184 = scmp.ne.s32.totalorder %s170, %s171
      %p185 = scmp.eq.s32.totalorder %s27, 1
      %p186 = por %p184, %p185
      %p188 = scmp.ne.s32.totalorder %s171, %s187
      %p189 = scmp.eq.s32.totalorder %s27, 0
      %p190 = por %p188, %p189
      %p191 = scmp.le.s32.totalorder 1, %s21
      %p192 = scmp.lt.s32.totalorder %s21, 3
      %p193 = pnand %p191, %p192
      %p194 = pneg %p193
      // Predicated region
      $region9: #{tpu_custom_call.1} parent=5 // pred_check
        _
      $region10: #{tpu_custom_call.1} parent=5 // pred_check_branch
        %196 = sbr.rel (%p193) target = $region12
      $region11: #{tpu_custom_call.1} parent=5 // pred_region
        %s197 = ssub.s32 %s21, 1
        // Predicated region
        $region13: #{tpu_custom_call.1} parent=11 // pred_check
          %p198 = pneg %p94
        $region14: #{tpu_custom_call.1} parent=11 // pred_check_branch
          %200 = sbr.rel (%p198) target = $region16
        $region15: #{tpu_custom_call.1} parent=11 // pred_region
          _
        $region16: #{tpu_custom_call.1} parent=11 // pred_fallthru
          _
        // Predicated region
        $region17: #{tpu_custom_call.1} parent=11 // pred_check
          %p201 = pneg %p115
        $region18: #{tpu_custom_call.1} parent=11 // pred_check_branch
          %203 = sbr.rel (%p201) target = $region20
        $region19: #{tpu_custom_call.1} parent=11 // pred_region
          _
        $region20: #{tpu_custom_call.1} parent=11 // pred_fallthru
          _
        // Predicated region
        $region21: #{tpu_custom_call.1} parent=11 // pred_check
          %p204 = pneg %p136
        $region22: #{tpu_custom_call.1} parent=11 // pred_check_branch
          %206 = sbr.rel (%p204) target = $region24
        $region23: #{tpu_custom_call.1} parent=11 // pred_region
          _
        $region24: #{tpu_custom_call.1} parent=11 // pred_fallthru
          _
        // Predicated region
        $region25: #{tpu_custom_call.1} parent=11 // pred_check
          %p207 = pneg %p157
        $region26: #{tpu_custom_call.1} parent=11 // pred_check_branch
          %209 = sbr.rel (%p207) target = $region28
        $region27: #{tpu_custom_call.1} parent=11 // pred_region
          _
        $region28: #{tpu_custom_call.1} parent=11 // pred_fallthru
          _
      $region12: #{tpu_custom_call.1} parent=5 // pred_fallthru
        _
      %p210 = scmp.lt.s32.totalorder %s21, 2
      // Predicated region
      $region29: #{tpu_custom_call.1} parent=5 // pred_check
        %p211 = pneg %p210
      $region30: #{tpu_custom_call.1} parent=5 // pred_check_branch
        %213 = sbr.rel (%p211) target = $region32
      $region31: #{tpu_custom_call.1} parent=5 // pred_region
        // Predicated region
        $region33: #{tpu_custom_call.1} parent=31 // pred_check
          %p214 = pneg %p41
        $region34: #{tpu_custom_call.1} parent=31 // pred_check_branch
          %216 = sbr.rel (%p214) target = $region36
        $region35: #{tpu_custom_call.1} parent=31 // pred_region
          %s217 = sand.u32 %s31, 1
          %s218 = scalar_lea.sflag [#allocation3], %s217
          %s219 = sand.u32 %s31, 1
          %s220 = smul.addr %s219, 64
          %s221 = scalar_lea.vmem [#allocation2], %s220
          %s222 = smul.u32 4, %s21
          %s224 = ssub.s32 1024, 1024
          %225 = vsyncadd %s218, %s224
          %s226 = smul.addr %s222, 2
          %s227 = smul.addr %s226, 128
          %s228 = scalar_lea.hbm %s0, %s227
          %s229 = sshll.u32 %s221, 4
          %s230 = int_to_ptr.vmem [resolvable:$true] %s229
          %235 = dma.hbm_to_vmem [thread:$0]  %s228, 1024, %s230, %s218, 128, 128, 8
        $region36: #{tpu_custom_call.1} parent=31 // pred_fallthru
          _
        // Predicated region
        $region37: #{tpu_custom_call.1} parent=31 // pred_check
          %p236 = pneg %p67
        $region38: #{tpu_custom_call.1} parent=31 // pred_check_branch
          %238 = sbr.rel (%p236) target = $region40
        $region39: #{tpu_custom_call.1} parent=31 // pred_region
          %s239 = sand.u32 %s57, 1
          %s240 = scalar_lea.sflag [#allocation6], %s239
          %s241 = sand.u32 %s57, 1
          %s242 = smul.addr %s241, 64
          %s243 = scalar_lea.vmem [#allocation5], %s242
          %s244 = smul.u32 4, %s21
          %s246 = ssub.s32 1024, 1024
          %247 = vsyncadd %s240, %s246
          %s248 = smul.addr %s244, 2
          %s249 = smul.addr %s248, 128
          %s250 = scalar_lea.hbm %s1, %s249
          %s251 = sshll.u32 %s243, 4
          %s252 = int_to_ptr.vmem [resolvable:$true] %s251
          %257 = dma.hbm_to_vmem [thread:$0]  %s250, 1024, %s252, %s240, 128, 128, 8
        $region40: #{tpu_custom_call.1} parent=31 // pred_fallthru
          _
      $region32: #{tpu_custom_call.1} parent=5 // pred_fallthru
        _
      %p258 = scmp.le.s32.totalorder 1, %s21
      %p259 = scmp.lt.s32.totalorder %s21, 3
      %p260 = pnand %p258, %p259
      %p261 = pneg %p260
      // Predicated region
      $region41: #{tpu_custom_call.1} parent=5 // pred_check
        _
      $region42: #{tpu_custom_call.1} parent=5 // pred_check_branch
        %263 = sbr.rel (%p260) target = $region44
      $region43: #{tpu_custom_call.1} parent=5 // pred_region
        %s264 = ssub.s32 %s21, 1
        %s265 = sand.u32 %s34, 1
        %s266 = scalar_lea.sflag [#allocation3], %s265
        %s267 = sand.u32 %s34, 1
        %s268 = smul.addr %s267, 64
        %s269 = scalar_lea.vmem [#allocation2], %s268
        // Predicated region
        $region45: #{tpu_custom_call.1} parent=43 // pred_check
          %p270 = pneg %p47
        $region46: #{tpu_custom_call.1} parent=43 // pred_check_branch
          %272 = sbr.rel (%p270) target = $region48
        $region47: #{tpu_custom_call.1} parent=43 // pred_region
          %273 = dma.done %s266, 1024
        $region48: #{tpu_custom_call.1} parent=43 // pred_fallthru
          _
        %s274 = sand.u32 %s60, 1
        %s275 = scalar_lea.sflag [#allocation6], %s274
        %s276 = sand.u32 %s60, 1
        %s277 = smul.addr %s276, 64
        %s278 = scalar_lea.vmem [#allocation5], %s277
        // Predicated region
        $region49: #{tpu_custom_call.1} parent=43 // pred_check
          %p279 = pneg %p73
        $region50: #{tpu_custom_call.1} parent=43 // pred_check_branch
          %281 = sbr.rel (%p279) target = $region52
        $region51: #{tpu_custom_call.1} parent=43 // pred_region
          %282 = dma.done %s275, 1024
        $region52: #{tpu_custom_call.1} parent=43 // pred_fallthru
          _
        %s283 = sand.u32 %s34, 1
        %s284 = scalar_lea.sflag [#allocation3], %s283
        %s285 = sand.u32 %s34, 1
        %s286 = smul.addr %s285, 64
        %s287 = scalar_lea.vmem [#allocation2], %s286
        %p288 = pneg %p47
        %p289 = pneg %p44
        %s290 = sand.u32 %s60, 1
        %s291 = scalar_lea.sflag [#allocation6], %s290
        %s292 = sand.u32 %s60, 1
        %s293 = smul.addr %s292, 64
        %s294 = scalar_lea.vmem [#allocation5], %s293
        %p295 = pneg %p73
        %p296 = pneg %p70
        %p297 = pneg %p94
        %p298 = pneg %p91
        %p299 = pneg %p115
        %p300 = pneg %p112
        %p301 = pneg %p136
        %p302 = pneg %p133
        %p303 = pneg %p157
        %p304 = pneg %p154
        %p305 = pneg %p183
        %p306 = pneg %p180
        %s307 = sand.u32 %s170, 1
        %s308 = scalar_lea.sflag [#allocation4], %s307
        %s309 = sand.u32 %s170, 1
        %s310 = smul.addr %s309, 64
        %s311 = scalar_lea.vmem [#allocation7], %s310
        %s312 = smul.u32 4, %s26
        %s313 = smul.u32 4, %s26
        %s314 = smul.u32 8, %s26
        %v315 = vld [vmem:[%s269] sm:$0xff]
        %v316 = vld [vmem:[%s269 + $0x8] sm:$0xff]
        %v317 = vld [vmem:[%s269 + $0x10] sm:$0xff]
        %v318 = vld [vmem:[%s269 + $0x18] sm:$0xff]
        %v319 = vld [vmem:[%s269 + $0x20] sm:$0xff]
        %v320 = vld [vmem:[%s269 + $0x28] sm:$0xff]
        %v321 = vld [vmem:[%s269 + $0x30] sm:$0xff]
        %v322 = vld [vmem:[%s269 + $0x38] sm:$0xff]
        %v323 = vld [vmem:[%s278] sm:$0xff]
        %v324 = vld [vmem:[%s278 + $0x8] sm:$0xff]
        %v325 = vld [vmem:[%s278 + $0x10] sm:$0xff]
        %v326 = vld [vmem:[%s278 + $0x18] sm:$0xff]
        %v327 = vld [vmem:[%s278 + $0x20] sm:$0xff]
        %v328 = vld [vmem:[%s278 + $0x28] sm:$0xff]
        %v329 = vld [vmem:[%s278 + $0x30] sm:$0xff]
        %v330 = vld [vmem:[%s278 + $0x38] sm:$0xff]
        %v331 = vld [vmem:[%s2] sm:$0xff]
        %v332 = vld [vmem:[%s2 + $0x8] sm:$0xff]
        %v333 = vld [vmem:[%s2 + $0x10] sm:$0xff]
        %v334 = vld [vmem:[%s2 + $0x18] sm:$0xff]
        %v335 = vld [vmem:[%s3] sm:$0xff]
        %v336 = vld [vmem:[%s3 + $0x8] sm:$0xff]
        %v337 = vld [vmem:[%s4] sm:$0xff]
        %v338 = vld [vmem:[%s4 + $0x8] sm:$0xff]
        %v339 = vld [vmem:[%s4 + $0x10] sm:$0xff]
        %v340 = vld [vmem:[%s4 + $0x18] sm:$0xff]
        %v341 = vld [vmem:[%s5] sm:$0xff]
        %v342 = vld [vmem:[%s5 + $0x8] sm:$0xff]
        %vm343 = vcmask 130048
        %v345 = vsel %vm343, %v331, 0
        %v348 = vsel %vm343, %v332, 0
        %v351 = vsel %vm343, %v333, 0
        %v354 = vsel %vm343, %v334, 0
        %356 = vmatprep.subr.mxu0 0.0
        %357 = vmatpush1.msra.mxu0 %v315
        %358 = vmatprep.subr.mxu0 0.0
        %359 = vmatpush1.msra.mxu0 %v316
        %360 = vmatprep.subr.mxu0 0.0
        %361 = vmatpush1.msra.mxu0 0.0
        %362 = vmatprep.subr.mxu0 0.0
        %363 = vmatpush1.msra.mxu0 0.0
        %364 = vmatprep.subr.mxu0 0.0
        %365 = vmatpush1.msra.mxu0 0.0
        %366 = vmatprep.subr.mxu0 0.0
        %367 = vmatpush1.msra.mxu0 0.0
        %368 = vmatprep.subr.mxu0 0.0
        %369 = vmatpush1.msra.mxu0 0.0
        %370 = vmatprep.subr.mxu0 0.0
        %371 = vmatpush1.msra.mxu0 0.0
        %372 = vmatprep.subr.mxu0 0.0
        %373 = vmatpush1.msra.mxu0 0.0
        %374 = vmatprep.subr.mxu0 0.0
        %375 = vmatpush1.msra.mxu0 0.0
        %376 = vmatprep.subr.mxu0 0.0
        %377 = vmatpush1.msra.mxu0 0.0
        %378 = vmatprep.subr.mxu0 0.0
        %379 = vmatpush1.msra.mxu0 0.0
        %380 = vmatprep.subr.mxu0 0.0
        %381 = vmatpush1.msra.mxu0 0.0
        %382 = vmatprep.subr.mxu0 0.0
        %383 = vmatpush1.msra.mxu0 0.0
        %384 = vmatprep.subr.mxu0 0.0
        %385 = vmatpush1.msra.mxu0 0.0
        %386 = vmatprep.subr.mxu0 0.0
        %387 = vmatpush1.msra.mxu0 0.0
        %388 = vmatprep.subr.mxu0 0.0
        %389 = vmatpush1.msra.mxu0 0.0
        %390 = vmatprep.subr.mxu0 0.0
        %391 = vmatpush1.msra.mxu0 0.0
        %392 = vmatprep.subr.mxu0 0.0
        %393 = vmatpush1.msra.mxu0 0.0
        %394 = vmatprep.subr.mxu0 0.0
        %395 = vmatpush1.msra.mxu0 0.0
        %396 = vmatprep.subr.mxu0 0.0
        %397 = vmatpush1.msra.mxu0 0.0
        %398 = vmatprep.subr.mxu0 0.0
        %399 = vmatpush1.msra.mxu0 0.0
        %400 = vmatprep.subr.mxu0 0.0
        %401 = vmatpush1.msra.mxu0 0.0
        %402 = vmatprep.subr.mxu0 0.0
        %403 = vmatpush1.msra.mxu0 0.0
        %404 = vmatprep.subr.mxu0 0.0
        %405 = vmatpush1.msra.mxu0 0.0
        %406 = vmatprep.subr.mxu0 0.0
        %407 = vmatpush1.msra.mxu0 0.0
        %408 = vmatprep.subr.mxu0 0.0
        %409 = vmatpush1.msra.mxu0 0.0
        %410 = vmatprep.subr.mxu0 0.0
        %411 = vmatpush1.msra.mxu0 0.0
        %412 = vmatprep.subr.mxu0 0.0
        %413 = vmatpush1.msra.mxu0 0.0
        %414 = vmatprep.subr.mxu0 0.0
        %415 = vmatpush1.msra.mxu0 0.0
        %416 = vmatprep.subr.mxu0 0.0
        %417 = vmatpush1.msra.mxu0 0.0
        %418 = vmatprep.subr.mxu0 0.0
        %419 = vmatpush1.msra.mxu0 0.0
        %420 = vmatprep.mubr.f32.mxu0 0.0
        %421 = vmatmul.mubr.f32.gmra.mrb[0].mxu0 %v345
        %v422 = vpop.f32.mrb[0].mxu0
        %v423 = vadd.f32 0.0, %v422
        %v424 = vpop.f32.mrb[0].mxu0
        %425 = vmatprep.mubr.f32.mxu0 0.0
        %426 = vmatmul.mubr.f32.gmra.mrb[0].mxu0 %v348
        %v427 = vpop.f32.mrb[0].mxu0
        %v428 = vadd.f32 0.0, %v427
        %v429 = vpop.f32.mrb[0].mxu0
        %430 = vmatprep.mubr.f32.mxu0 0.0
        %431 = vmatmul.mubr.f32.gmra.mrb[0].mxu0 %v351
        %v432 = vpop.f32.mrb[0].mxu0
        %v433 = vadd.f32 0.0, %v432
        %v434 = vpop.f32.mrb[0].mxu0
        %435 = vmatprep.mubr.f32.mxu0 0.0
        %436 = vmatmul.mubr.f32.gmra.mrb[0].mxu0 %v354
        %v437 = vpop.f32.mrb[0].mxu0
        %v438 = vadd.f32 0.0, %v437
        %v439 = vpop.f32.mrb[0].mxu0
        %440 = vdwg.mxu0
        %441 = vmatprep.subr.mxu0 0.0
        %442 = vmatpush1.msra.mxu0 %v317
        %443 = vmatprep.subr.mxu0 0.0
        %444 = vmatpush1.msra.mxu0 %v318
        %445 = vmatprep.subr.mxu0 0.0
        %446 = vmatpush1.msra.mxu0 0.0
        %447 = vmatprep.subr.mxu0 0.0
        %448 = vmatpush1.msra.mxu0 0.0
        %449 = vmatprep.subr.mxu0 0.0
        %450 = vmatpush1.msra.mxu0 0.0
        %451 = vmatprep.subr.mxu0 0.0
        %452 = vmatpush1.msra.mxu0 0.0
        %453 = vmatprep.subr.mxu0 0.0
        %454 = vmatpush1.msra.mxu0 0.0
        %455 = vmatprep.subr.mxu0 0.0
        %456 = vmatpush1.msra.mxu0 0.0
        %457 = vmatprep.subr.mxu0 0.0
        %458 = vmatpush1.msra.mxu0 0.0
        %459 = vmatprep.subr.mxu0 0.0
        %460 = vmatpush1.msra.mxu0 0.0
        %461 = vmatprep.subr.mxu0 0.0
        %462 = vmatpush1.msra.mxu0 0.0
        %463 = vmatprep.subr.mxu0 0.0
        %464 = vmatpush1.msra.mxu0 0.0
        %465 = vmatprep.subr.mxu0 0.0
        %466 = vmatpush1.msra.mxu0 0.0
        %467 = vmatprep.subr.mxu0 0.0
        %468 = vmatpush1.msra.mxu0 0.0
        %469 = vmatprep.subr.mxu0 0.0
        %470 = vmatpush1.msra.mxu0 0.0
        %471 = vmatprep.subr.mxu0 0.0
        %472 = vmatpush1.msra.mxu0 0.0
        %473 = vmatprep.subr.mxu0 0.0
        %474 = vmatpush1.msra.mxu0 0.0
        %475 = vmatprep.subr.mxu0 0.0
        %476 = vmatpush1.msra.mxu0 0.0
        %477 = vmatprep.subr.mxu0 0.0
        %478 = vmatpush1.msra.mxu0 0.0
        %479 = vmatprep.subr.mxu0 0.0
        %480 = vmatpush1.msra.mxu0 0.0
        %481 = vmatprep.subr.mxu0 0.0
        %482 = vmatpush1.msra.mxu0 0.0
        %483 = vmatprep.subr.mxu0 0.0
        %484 = vmatpush1.msra.mxu0 0.0
        %485 = vmatprep.subr.mxu0 0.0
        %486 = vmatpush1.msra.mxu0 0.0
        %487 = vmatprep.subr.mxu0 0.0
        %488 = vmatpush1.msra.mxu0 0.0
        %489 = vmatprep.subr.mxu0 0.0
        %490 = vmatpush1.msra.mxu0 0.0
        %491 = vmatprep.subr.mxu0 0.0
        %492 = vmatpush1.msra.mxu0 0.0
        %493 = vmatprep.subr.mxu0 0.0
        %494 = vmatpush1.msra.mxu0 0.0
        %495 = vmatprep.subr.mxu0 0.0
        %496 = vmatpush1.msra.mxu0 0.0
        %497 = vmatprep.subr.mxu0 0.0
        %498 = vmatpush1.msra.mxu0 0.0
        %499 = vmatprep.subr.mxu0 0.0
        %500 = vmatpush1.msra.mxu0 0.0
        %501 = vmatprep.subr.mxu0 0.0
        %502 = vmatpush1.msra.mxu0 0.0
        %503 = vmatprep.subr.mxu0 0.0
        %504 = vmatpush1.msra.mxu0 0.0
        %505 = vmatprep.mubr.f32.mxu0 0.0
        %506 = vmatmul.mubr.f32.gmra.mrb[0].mxu0 %v345
        %v507 = vpop.f32.mrb[0].mxu0
        %v508 = vadd.f32 0.0, %v507
        %v509 = vpop.f32.mrb[0].mxu0
        %510 = vmatprep.mubr.f32.mxu0 0.0
        %511 = vmatmul.mubr.f32.gmra.mrb[0].mxu0 %v348
        %v512 = vpop.f32.mrb[0].mxu0
        %v513 = vadd.f32 0.0, %v512
        %v514 = vpop.f32.mrb[0].mxu0
        %515 = vmatprep.mubr.f32.mxu0 0.0
        %516 = vmatmul.mubr.f32.gmra.mrb[0].mxu0 %v351
        %v517 = vpop.f32.mrb[0].mxu0
        %v518 = vadd.f32 0.0, %v517
        %v519 = vpop.f32.mrb[0].mxu0
        %520 = vmatprep.mubr.f32.mxu0 0.0
        %521 = vmatmul.mubr.f32.gmra.mrb[0].mxu0 %v354
        %v522 = vpop.f32.mrb[0].mxu0
        %v523 = vadd.f32 0.0, %v522
        %v524 = vpop.f32.mrb[0].mxu0
        %525 = vdwg.mxu0
        %526 = vmatprep.subr.mxu0 0.0
        %527 = vmatpush1.msra.mxu0 %v319
        %528 = vmatprep.subr.mxu0 0.0
        %529 = vmatpush1.msra.mxu0 %v320
        %530 = vmatprep.subr.mxu0 0.0
        %531 = vmatpush1.msra.mxu0 0.0
        %532 = vmatprep.subr.mxu0 0.0
        %533 = vmatpush1.msra.mxu0 0.0
        %534 = vmatprep.subr.mxu0 0.0
        %535 = vmatpush1.msra.mxu0 0.0
        %536 = vmatprep.subr.mxu0 0.0
        %537 = vmatpush1.msra.mxu0 0.0
        %538 = vmatprep.subr.mxu0 0.0
        %539 = vmatpush1.msra.mxu0 0.0
        %540 = vmatprep.subr.mxu0 0.0
        %541 = vmatpush1.msra.mxu0 0.0
        %542 = vmatprep.subr.mxu0 0.0
        %543 = vmatpush1.msra.mxu0 0.0
        %544 = vmatprep.subr.mxu0 0.0
        %545 = vmatpush1.msra.mxu0 0.0
        %546 = vmatprep.subr.mxu0 0.0
        %547 = vmatpush1.msra.mxu0 0.0
        %548 = vmatprep.subr.mxu0 0.0
        %549 = vmatpush1.msra.mxu0 0.0
        %550 = vmatprep.subr.mxu0 0.0
        %551 = vmatpush1.msra.mxu0 0.0
        %552 = vmatprep.subr.mxu0 0.0
        %553 = vmatpush1.msra.mxu0 0.0
        %554 = vmatprep.subr.mxu0 0.0
        %555 = vmatpush1.msra.mxu0 0.0
        %556 = vmatprep.subr.mxu0 0.0
        %557 = vmatpush1.msra.mxu0 0.0
        %558 = vmatprep.subr.mxu0 0.0
        %559 = vmatpush1.msra.mxu0 0.0
        %560 = vmatprep.subr.mxu0 0.0
        %561 = vmatpush1.msra.mxu0 0.0
        %562 = vmatprep.subr.mxu0 0.0
        %563 = vmatpush1.msra.mxu0 0.0
        %564 = vmatprep.subr.mxu0 0.0
        %565 = vmatpush1.msra.mxu0 0.0
        %566 = vmatprep.subr.mxu0 0.0
        %567 = vmatpush1.msra.mxu0 0.0
        %568 = vmatprep.subr.mxu0 0.0
        %569 = vmatpush1.msra.mxu0 0.0
        %570 = vmatprep.subr.mxu0 0.0
        %571 = vmatpush1.msra.mxu0 0.0
        %572 = vmatprep.subr.mxu0 0.0
        %573 = vmatpush1.msra.mxu0 0.0
        %574 = vmatprep.subr.mxu0 0.0
        %575 = vmatpush1.msra.mxu0 0.0
        %576 = vmatprep.subr.mxu0 0.0
        %577 = vmatpush1.msra.mxu0 0.0
        %578 = vmatprep.subr.mxu0 0.0
        %579 = vmatpush1.msra.mxu0 0.0
        %580 = vmatprep.subr.mxu0 0.0
        %581 = vmatpush1.msra.mxu0 0.0
        %582 = vmatprep.subr.mxu0 0.0
        %583 = vmatpush1.msra.mxu0 0.0
        %584 = vmatprep.subr.mxu0 0.0
        %585 = vmatpush1.msra.mxu0 0.0
        %586 = vmatprep.subr.mxu0 0.0
        %587 = vmatpush1.msra.mxu0 0.0
        %588 = vmatprep.subr.mxu0 0.0
        %589 = vmatpush1.msra.mxu0 0.0
        %590 = vmatprep.mubr.f32.mxu0 0.0
        %591 = vmatmul.mubr.f32.gmra.mrb[0].mxu0 %v345
        %v592 = vpop.f32.mrb[0].mxu0
        %v593 = vadd.f32 0.0, %v592
        %v594 = vpop.f32.mrb[0].mxu0
        %595 = vmatprep.mubr.f32.mxu0 0.0
        %596 = vmatmul.mubr.f32.gmra.mrb[0].mxu0 %v348
        %v597 = vpop.f32.mrb[0].mxu0
        %v598 = vadd.f32 0.0, %v597
        %v599 = vpop.f32.mrb[0].mxu0
        %600 = vmatprep.mubr.f32.mxu0 0.0
        %601 = vmatmul.mubr.f32.gmra.mrb[0].mxu0 %v351
        %v602 = vpop.f32.mrb[0].mxu0
        %v603 = vadd.f32 0.0, %v602
        %v604 = vpop.f32.mrb[0].mxu0
        %605 = vmatprep.mubr.f32.mxu0 0.0
        %606 = vmatmul.mubr.f32.gmra.mrb[0].mxu0 %v354
        %v607 = vpop.f32.mrb[0].mxu0
        %v608 = vadd.f32 0.0, %v607
        %v609 = vpop.f32.mrb[0].mxu0
        %610 = vdwg.mxu0
        %611 = vmatprep.subr.mxu0 0.0
        %612 = vmatpush1.msra.mxu0 %v321
        %613 = vmatprep.subr.mxu0 0.0
        %614 = vmatpush1.msra.mxu0 %v322
        %615 = vmatprep.subr.mxu0 0.0
        %616 = vmatpush1.msra.mxu0 0.0
        %617 = vmatprep.subr.mxu0 0.0
        %618 = vmatpush1.msra.mxu0 0.0
        %619 = vmatprep.subr.mxu0 0.0
        %620 = vmatpush1.msra.mxu0 0.0
        %621 = vmatprep.subr.mxu0 0.0
        %622 = vmatpush1.msra.mxu0 0.0
        %623 = vmatprep.subr.mxu0 0.0
        %624 = vmatpush1.msra.mxu0 0.0
        %625 = vmatprep.subr.mxu0 0.0
        %626 = vmatpush1.msra.mxu0 0.0
        %627 = vmatprep.subr.mxu0 0.0
        %628 = vmatpush1.msra.mxu0 0.0
        %629 = vmatprep.subr.mxu0 0.0
        %630 = vmatpush1.msra.mxu0 0.0
        %631 = vmatprep.subr.mxu0 0.0
        %632 = vmatpush1.msra.mxu0 0.0
        %633 = vmatprep.subr.mxu0 0.0
        %634 = vmatpush1.msra.mxu0 0.0
        %635 = vmatprep.subr.mxu0 0.0
        %636 = vmatpush1.msra.mxu0 0.0
        %637 = vmatprep.subr.mxu0 0.0
        %638 = vmatpush1.msra.mxu0 0.0
        %639 = vmatprep.subr.mxu0 0.0
        %640 = vmatpush1.msra.mxu0 0.0
        %641 = vmatprep.subr.mxu0 0.0
        %642 = vmatpush1.msra.mxu0 0.0
        %643 = vmatprep.subr.mxu0 0.0
        %644 = vmatpush1.msra.mxu0 0.0
        %645 = vmatprep.subr.mxu0 0.0
        %646 = vmatpush1.msra.mxu0 0.0
        %647 = vmatprep.subr.mxu0 0.0
        %648 = vmatpush1.msra.mxu0 0.0
        %649 = vmatprep.subr.mxu0 0.0
        %650 = vmatpush1.msra.mxu0 0.0
        %651 = vmatprep.subr.mxu0 0.0
        %652 = vmatpush1.msra.mxu0 0.0
        %653 = vmatprep.subr.mxu0 0.0
        %654 = vmatpush1.msra.mxu0 0.0
        %655 = vmatprep.subr.mxu0 0.0
        %656 = vmatpush1.msra.mxu0 0.0
        %657 = vmatprep.subr.mxu0 0.0
        %658 = vmatpush1.msra.mxu0 0.0
        %659 = vmatprep.subr.mxu0 0.0
        %660 = vmatpush1.msra.mxu0 0.0
        %661 = vmatprep.subr.mxu0 0.0
        %662 = vmatpush1.msra.mxu0 0.0
        %663 = vmatprep.subr.mxu0 0.0
        %664 = vmatpush1.msra.mxu0 0.0
        %665 = vmatprep.subr.mxu0 0.0
        %666 = vmatpush1.msra.mxu0 0.0
        %667 = vmatprep.subr.mxu0 0.0
        %668 = vmatpush1.msra.mxu0 0.0
        %669 = vmatprep.subr.mxu0 0.0
        %670 = vmatpush1.msra.mxu0 0.0
        %671 = vmatprep.subr.mxu0 0.0
        %672 = vmatpush1.msra.mxu0 0.0
        %673 = vmatprep.subr.mxu0 0.0
        %674 = vmatpush1.msra.mxu0 0.0
        %675 = vmatprep.mubr.f32.mxu0 0.0
        %676 = vmatmul.mubr.f32.gmra.mrb[0].mxu0 %v345
        %v677 = vpop.f32.mrb[0].mxu0
        %v678 = vadd.f32 0.0, %v677
        %v679 = vpop.f32.mrb[0].mxu0
        %680 = vmatprep.mubr.f32.mxu0 0.0
        %681 = vmatmul.mubr.f32.gmra.mrb[0].mxu0 %v348
        %v682 = vpop.f32.mrb[0].mxu0
        %v683 = vadd.f32 0.0, %v682
        %v684 = vpop.f32.mrb[0].mxu0
        %685 = vmatprep.mubr.f32.mxu0 0.0
        %686 = vmatmul.mubr.f32.gmra.mrb[0].mxu0 %v351
        %v687 = vpop.f32.mrb[0].mxu0
        %v688 = vadd.f32 0.0, %v687
        %v689 = vpop.f32.mrb[0].mxu0
        %690 = vmatprep.mubr.f32.mxu0 0.0
        %691 = vmatmul.mubr.f32.gmra.mrb[0].mxu0 %v354
        %v692 = vpop.f32.mrb[0].mxu0
        %v693 = vadd.f32 0.0, %v692
        %v694 = vpop.f32.mrb[0].mxu0
        %695 = vdwg.mxu0
        %v697 = vsel %vm343, %v423, 0
        %v700 = vsel %vm343, %v428, 0
        %v703 = vsel %vm343, %v433, 0
        %v706 = vsel %vm343, %v438, 0
        %v709 = vsel %vm343, %v508, 0
        %v712 = vsel %vm343, %v513, 0
        %v715 = vsel %vm343, %v518, 0
        %v718 = vsel %vm343, %v523, 0
        %v721 = vsel %vm343, %v593, 0
        %v724 = vsel %vm343, %v598, 0
        %v727 = vsel %vm343, %v603, 0
        %v730 = vsel %vm343, %v608, 0
        %v733 = vsel %vm343, %v678, 0
        %v736 = vsel %vm343, %v683, 0
        %v739 = vsel %vm343, %v688, 0
        %v742 = vsel %vm343, %v693, 0
        %744 = vmatprep.subr.mxu0 0.0
        %745 = vmatpush1.msra.mxu0 %v335
        %746 = vmatprep.subr.mxu0 0.0
        %747 = vmatpush1.msra.mxu0 %v336
        %748 = vmatprep.subr.mxu0 0.0
        %749 = vmatpush1.msra.mxu0 0.0
        %750 = vmatprep.subr.mxu0 0.0
        %751 = vmatpush1.msra.mxu0 0.0
        %752 = vmatprep.subr.mxu0 0.0
        %753 = vmatpush1.msra.mxu0 0.0
        %754 = vmatprep.subr.mxu0 0.0
        %755 = vmatpush1.msra.mxu0 0.0
        %756 = vmatprep.subr.mxu0 0.0
        %757 = vmatpush1.msra.mxu0 0.0
        %758 = vmatprep.subr.mxu0 0.0
        %759 = vmatpush1.msra.mxu0 0.0
        %760 = vmatprep.subr.mxu0 0.0
        %761 = vmatpush1.msra.mxu0 0.0
        %762 = vmatprep.subr.mxu0 0.0
        %763 = vmatpush1.msra.mxu0 0.0
        %764 = vmatprep.subr.mxu0 0.0
        %765 = vmatpush1.msra.mxu0 0.0
        %766 = vmatprep.subr.mxu0 0.0
        %767 = vmatpush1.msra.mxu0 0.0
        %768 = vmatprep.subr.mxu0 0.0
        %769 = vmatpush1.msra.mxu0 0.0
        %770 = vmatprep.subr.mxu0 0.0
        %771 = vmatpush1.msra.mxu0 0.0
        %772 = vmatprep.subr.mxu0 0.0
        %773 = vmatpush1.msra.mxu0 0.0
        %774 = vmatprep.subr.mxu0 0.0
        %775 = vmatpush1.msra.mxu0 0.0
        %776 = vmatprep.subr.mxu0 0.0
        %777 = vmatpush1.msra.mxu0 0.0
        %778 = vmatprep.subr.mxu0 0.0
        %779 = vmatpush1.msra.mxu0 0.0
        %780 = vmatprep.subr.mxu0 0.0
        %781 = vmatpush1.msra.mxu0 0.0
        %782 = vmatprep.subr.mxu0 0.0
        %783 = vmatpush1.msra.mxu0 0.0
        %784 = vmatprep.subr.mxu0 0.0
        %785 = vmatpush1.msra.mxu0 0.0
        %786 = vmatprep.subr.mxu0 0.0
        %787 = vmatpush1.msra.mxu0 0.0
        %788 = vmatprep.subr.mxu0 0.0
        %789 = vmatpush1.msra.mxu0 0.0
        %790 = vmatprep.subr.mxu0 0.0
        %791 = vmatpush1.msra.mxu0 0.0
        %792 = vmatprep.subr.mxu0 0.0
        %793 = vmatpush1.msra.mxu0 0.0
        %794 = vmatprep.subr.mxu0 0.0
        %795 = vmatpush1.msra.mxu0 0.0
        %796 = vmatprep.subr.mxu0 0.0
        %797 = vmatpush1.msra.mxu0 0.0
        %798 = vmatprep.subr.mxu0 0.0
        %799 = vmatpush1.msra.mxu0 0.0
        %800 = vmatprep.subr.mxu0 0.0
        %801 = vmatpush1.msra.mxu0 0.0
        %802 = vmatprep.subr.mxu0 0.0
        %803 = vmatpush1.msra.mxu0 0.0
        %804 = vmatprep.subr.mxu0 0.0
        %805 = vmatpush1.msra.mxu0 0.0
        %806 = vmatprep.subr.mxu0 0.0
        %807 = vmatpush1.msra.mxu0 0.0
        %808 = vmatprep.mubr.f32.mxu0 0.0
        %809 = vmatmul.mubr.f32.gmra.mrb[0].mxu0 %v697
        %v810 = vpop.f32.mrb[0].mxu0
        %v811 = vadd.f32 0.0, %v810
        %v812 = vpop.f32.mrb[0].mxu0
        %813 = vmatprep.mubr.f32.mxu0 0.0
        %814 = vmatmul.mubr.f32.gmra.mrb[0].mxu0 %v700
        %v815 = vpop.f32.mrb[0].mxu0
        %v816 = vadd.f32 0.0, %v815
        %v817 = vpop.f32.mrb[0].mxu0
        %818 = vmatprep.mubr.f32.mxu0 0.0
        %819 = vmatmul.mubr.f32.gmra.mrb[0].mxu0 %v703
        %v820 = vpop.f32.mrb[0].mxu0
        %v821 = vadd.f32 0.0, %v820
        %v822 = vpop.f32.mrb[0].mxu0
        %823 = vmatprep.mubr.f32.mxu0 0.0
        %824 = vmatmul.mubr.f32.gmra.mrb[0].mxu0 %v706
        %v825 = vpop.f32.mrb[0].mxu0
        %v826 = vadd.f32 0.0, %v825
        %v827 = vpop.f32.mrb[0].mxu0
        %828 = vmatprep.mubr.f32.mxu0 0.0
        %829 = vmatmul.mubr.f32.gmra.mrb[0].mxu0 %v709
        %v830 = vpop.f32.mrb[0].mxu0
        %v831 = vadd.f32 0.0, %v830
        %v832 = vpop.f32.mrb[0].mxu0
        %833 = vmatprep.mubr.f32.mxu0 0.0
        %834 = vmatmul.mubr.f32.gmra.mrb[0].mxu0 %v712
        %v835 = vpop.f32.mrb[0].mxu0
        %v836 = vadd.f32 0.0, %v835
        %v837 = vpop.f32.mrb[0].mxu0
        %838 = vmatprep.mubr.f32.mxu0 0.0
        %839 = vmatmul.mubr.f32.gmra.mrb[0].mxu0 %v715
        %v840 = vpop.f32.mrb[0].mxu0
        %v841 = vadd.f32 0.0, %v840
        %v842 = vpop.f32.mrb[0].mxu0
        %843 = vmatprep.mubr.f32.mxu0 0.0
        %844 = vmatmul.mubr.f32.gmra.mrb[0].mxu0 %v718
        %v845 = vpop.f32.mrb[0].mxu0
        %v846 = vadd.f32 0.0, %v845
        %v847 = vpop.f32.mrb[0].mxu0
        %848 = vmatprep.mubr.f32.mxu0 0.0
        %849 = vmatmul.mubr.f32.gmra.mrb[0].mxu0 %v721
        %v850 = vpop.f32.mrb[0].mxu0
        %v851 = vadd.f32 0.0, %v850
        %v852 = vpop.f32.mrb[0].mxu0
        %853 = vmatprep.mubr.f32.mxu0 0.0
        %854 = vmatmul.mubr.f32.gmra.mrb[0].mxu0 %v724
        %v855 = vpop.f32.mrb[0].mxu0
        %v856 = vadd.f32 0.0, %v855
        %v857 = vpop.f32.mrb[0].mxu0
        %858 = vmatprep.mubr.f32.mxu0 0.0
        %859 = vmatmul.mubr.f32.gmra.mrb[0].mxu0 %v727
        %v860 = vpop.f32.mrb[0].mxu0
        %v861 = vadd.f32 0.0, %v860
        %v862 = vpop.f32.mrb[0].mxu0
        %863 = vmatprep.mubr.f32.mxu0 0.0
        %864 = vmatmul.mubr.f32.gmra.mrb[0].mxu0 %v730
        %v865 = vpop.f32.mrb[0].mxu0
        %v866 = vadd.f32 0.0, %v865
        %v867 = vpop.f32.mrb[0].mxu0
        %868 = vmatprep.mubr.f32.mxu0 0.0
        %869 = vmatmul.mubr.f32.gmra.mrb[0].mxu0 %v733
        %v870 = vpop.f32.mrb[0].mxu0
        %v871 = vadd.f32 0.0, %v870
        %v872 = vpop.f32.mrb[0].mxu0
        %873 = vmatprep.mubr.f32.mxu0 0.0
        %874 = vmatmul.mubr.f32.gmra.mrb[0].mxu0 %v736
        %v875 = vpop.f32.mrb[0].mxu0
        %v876 = vadd.f32 0.0, %v875
        %v877 = vpop.f32.mrb[0].mxu0
        %878 = vmatprep.mubr.f32.mxu0 0.0
        %879 = vmatmul.mubr.f32.gmra.mrb[0].mxu0 %v739
        %v880 = vpop.f32.mrb[0].mxu0
        %v881 = vadd.f32 0.0, %v880
        %v882 = vpop.f32.mrb[0].mxu0
        %883 = vmatprep.mubr.f32.mxu0 0.0
        %884 = vmatmul.mubr.f32.gmra.mrb[0].mxu0 %v742
        %v885 = vpop.f32.mrb[0].mxu0
        %v886 = vadd.f32 0.0, %v885
        %v887 = vpop.f32.mrb[0].mxu0
        %888 = vdwg.mxu0
        %897 = vrot.lane.b32.xlu0 %v821, 112
        %v898 = vpop.permute.xlu0 %897
        %899 = vrot.lane.b32.xlu0 %v826, 112
        %v900 = vpop.permute.xlu0 %899
        %901 = vrot.lane.b32.xlu0 %v841, 112
        %v902 = vpop.permute.xlu0 %901
        %903 = vrot.lane.b32.xlu0 %v846, 112
        %v904 = vpop.permute.xlu0 %903
        %905 = vrot.lane.b32.xlu0 %v861, 112
        %v906 = vpop.permute.xlu0 %905
        %907 = vrot.lane.b32.xlu0 %v866, 112
        %v908 = vpop.permute.xlu0 %907
        %909 = vrot.lane.b32.xlu0 %v881, 112
        %v910 = vpop.permute.xlu0 %909
        %911 = vrot.lane.b32.xlu0 %v886, 112
        %v912 = vpop.permute.xlu0 %911
        %v921 = vadd.f32 %v811, %v898
        %v922 = vadd.f32 %v816, %v900
        %v923 = vadd.f32 %v831, %v902
        %v924 = vadd.f32 %v836, %v904
        %v925 = vadd.f32 %v851, %v906
        %v926 = vadd.f32 %v856, %v908
        %v927 = vadd.f32 %v871, %v910
        %v928 = vadd.f32 %v876, %v912
        %937 = vrot.lane.b32.xlu0 %v811, 112
        %v938 = vpop.permute.xlu0 %937
        %939 = vrot.lane.b32.xlu0 %v816, 112
        %v940 = vpop.permute.xlu0 %939
        %941 = vrot.lane.b32.xlu0 %v831, 112
        %v942 = vpop.permute.xlu0 %941
        %943 = vrot.lane.b32.xlu0 %v836, 112
        %v944 = vpop.permute.xlu0 %943
        %945 = vrot.lane.b32.xlu0 %v851, 112
        %v946 = vpop.permute.xlu0 %945
        %947 = vrot.lane.b32.xlu0 %v856, 112
        %v948 = vpop.permute.xlu0 %947
        %949 = vrot.lane.b32.xlu0 %v871, 112
        %v950 = vpop.permute.xlu0 %949
        %951 = vrot.lane.b32.xlu0 %v876, 112
        %v952 = vpop.permute.xlu0 %951
        %v961 = vsub.f32 %v821, %v938
        %v962 = vsub.f32 %v826, %v940
        %v963 = vsub.f32 %v841, %v942
        %v964 = vsub.f32 %v846, %v944
        %v965 = vsub.f32 %v861, %v946
        %v966 = vsub.f32 %v866, %v948
        %v967 = vsub.f32 %v881, %v950
        %v968 = vsub.f32 %v886, %v952
        %v969 = vmul.f32 %v921, %v323
        %v970 = vmul.f32 %v922, %v324
        %v971 = vmul.f32 %v923, %v325
        %v972 = vmul.f32 %v924, %v326
        %v973 = vmul.f32 %v925, %v327
        %v974 = vmul.f32 %v926, %v328
        %v975 = vmul.f32 %v927, %v329
        %v976 = vmul.f32 %v928, %v330
        %v977 = vmul.f32 %v961, %v323
        %v978 = vmul.f32 %v962, %v324
        %v979 = vmul.f32 %v963, %v325
        %v980 = vmul.f32 %v964, %v326
        %v981 = vmul.f32 %v965, %v327
        %v982 = vmul.f32 %v966, %v328
        %v983 = vmul.f32 %v967, %v329
        %v984 = vmul.f32 %v968, %v330
        %vm985 = vcmask 261120
        %v987 = vsel %vm985, %v337, 0
        %v990 = vsel %vm985, %v338, 0
        %v993 = vsel %vm985, %v339, 0
        %v996 = vsel %vm985, %v340, 0
        %998 = vmatprep.subr.mxu0 0.0
        %999 = vmatpush1.msra.mxu0 %v969
        %1000 = vmatprep.subr.mxu0 0.0
        %1001 = vmatpush1.msra.mxu0 %v970
        %1002 = vmatprep.subr.mxu0 0.0
        %1003 = vmatpush1.msra.mxu0 %v977
        %1004 = vmatprep.subr.mxu0 0.0
        %1005 = vmatpush1.msra.mxu0 %v978
        %1006 = vmatprep.subr.mxu0 0.0
        %1007 = vmatpush1.msra.mxu0 0.0
        %1008 = vmatprep.subr.mxu0 0.0
        %1009 = vmatpush1.msra.mxu0 0.0
        %1010 = vmatprep.subr.mxu0 0.0
        %1011 = vmatpush1.msra.mxu0 0.0
        %1012 = vmatprep.subr.mxu0 0.0
        %1013 = vmatpush1.msra.mxu0 0.0
        %1014 = vmatprep.subr.mxu0 0.0
        %1015 = vmatpush1.msra.mxu0 0.0
        %1016 = vmatprep.subr.mxu0 0.0
        %1017 = vmatpush1.msra.mxu0 0.0
        %1018 = vmatprep.subr.mxu0 0.0
        %1019 = vmatpush1.msra.mxu0 0.0
        %1020 = vmatprep.subr.mxu0 0.0
        %1021 = vmatpush1.msra.mxu0 0.0
        %1022 = vmatprep.subr.mxu0 0.0
        %1023 = vmatpush1.msra.mxu0 0.0
        %1024 = vmatprep.subr.mxu0 0.0
        %1025 = vmatpush1.msra.mxu0 0.0
        %1026 = vmatprep.subr.mxu0 0.0
        %1027 = vmatpush1.msra.mxu0 0.0
        %1028 = vmatprep.subr.mxu0 0.0
        %1029 = vmatpush1.msra.mxu0 0.0
        %1030 = vmatprep.subr.mxu0 0.0
        %1031 = vmatpush1.msra.mxu0 0.0
        %1032 = vmatprep.subr.mxu0 0.0
        %1033 = vmatpush1.msra.mxu0 0.0
        %1034 = vmatprep.subr.mxu0 0.0
        %1035 = vmatpush1.msra.mxu0 0.0
        %1036 = vmatprep.subr.mxu0 0.0
        %1037 = vmatpush1.msra.mxu0 0.0
        %1038 = vmatprep.subr.mxu0 0.0
        %1039 = vmatpush1.msra.mxu0 0.0
        %1040 = vmatprep.subr.mxu0 0.0
        %1041 = vmatpush1.msra.mxu0 0.0
        %1042 = vmatprep.subr.mxu0 0.0
        %1043 = vmatpush1.msra.mxu0 0.0
        %1044 = vmatprep.subr.mxu0 0.0
        %1045 = vmatpush1.msra.mxu0 0.0
        %1046 = vmatprep.subr.mxu0 0.0
        %1047 = vmatpush1.msra.mxu0 0.0
        %1048 = vmatprep.subr.mxu0 0.0
        %1049 = vmatpush1.msra.mxu0 0.0
        %1050 = vmatprep.subr.mxu0 0.0
        %1051 = vmatpush1.msra.mxu0 0.0
        %1052 = vmatprep.subr.mxu0 0.0
        %1053 = vmatpush1.msra.mxu0 0.0
        %1054 = vmatprep.subr.mxu0 0.0
        %1055 = vmatpush1.msra.mxu0 0.0
        %1056 = vmatprep.subr.mxu0 0.0
        %1057 = vmatpush1.msra.mxu0 0.0
        %1058 = vmatprep.subr.mxu0 0.0
        %1059 = vmatpush1.msra.mxu0 0.0
        %1060 = vmatprep.subr.mxu0 0.0
        %1061 = vmatpush1.msra.mxu0 0.0
        %1062 = vmatprep.mubr.f32.mxu0 0.0
        %1063 = vmatmul.mubr.f32.gmra.mrb[0].mxu0 %v987
        %v1064 = vpop.f32.mrb[0].mxu0
        %v1065 = vadd.f32 0.0, %v1064
        %v1066 = vpop.f32.mrb[0].mxu0
        %1067 = vmatprep.mubr.f32.mxu0 0.0
        %1068 = vmatmul.mubr.f32.gmra.mrb[0].mxu0 %v990
        %v1069 = vpop.f32.mrb[0].mxu0
        %v1070 = vadd.f32 0.0, %v1069
        %v1071 = vpop.f32.mrb[0].mxu0
        %1072 = vmatprep.mubr.f32.mxu0 0.0
        %1073 = vmatmul.mubr.f32.gmra.mrb[0].mxu0 %v993
        %v1074 = vpop.f32.mrb[0].mxu0
        %v1075 = vadd.f32 0.0, %v1074
        %v1076 = vpop.f32.mrb[0].mxu0
        %1077 = vmatprep.mubr.f32.mxu0 0.0
        %1078 = vmatmul.mubr.f32.gmra.mrb[0].mxu0 %v996
        %v1079 = vpop.f32.mrb[0].mxu0
        %v1080 = vadd.f32 0.0, %v1079
        %v1081 = vpop.f32.mrb[0].mxu0
        %1082 = vdwg.mxu0
        %1083 = vmatprep.subr.mxu0 0.0
        %1084 = vmatpush1.msra.mxu0 %v971
        %1085 = vmatprep.subr.mxu0 0.0
        %1086 = vmatpush1.msra.mxu0 %v972
        %1087 = vmatprep.subr.mxu0 0.0
        %1088 = vmatpush1.msra.mxu0 %v979
        %1089 = vmatprep.subr.mxu0 0.0
        %1090 = vmatpush1.msra.mxu0 %v980
        %1091 = vmatprep.subr.mxu0 0.0
        %1092 = vmatpush1.msra.mxu0 0.0
        %1093 = vmatprep.subr.mxu0 0.0
        %1094 = vmatpush1.msra.mxu0 0.0
        %1095 = vmatprep.subr.mxu0 0.0
        %1096 = vmatpush1.msra.mxu0 0.0
        %1097 = vmatprep.subr.mxu0 0.0
        %1098 = vmatpush1.msra.mxu0 0.0
        %1099 = vmatprep.subr.mxu0 0.0
        %1100 = vmatpush1.msra.mxu0 0.0
        %1101 = vmatprep.subr.mxu0 0.0
        %1102 = vmatpush1.msra.mxu0 0.0
        %1103 = vmatprep.subr.mxu0 0.0
        %1104 = vmatpush1.msra.mxu0 0.0
        %1105 = vmatprep.subr.mxu0 0.0
        %1106 = vmatpush1.msra.mxu0 0.0
        %1107 = vmatprep.subr.mxu0 0.0
        %1108 = vmatpush1.msra.mxu0 0.0
        %1109 = vmatprep.subr.mxu0 0.0
        %1110 = vmatpush1.msra.mxu0 0.0
        %1111 = vmatprep.subr.mxu0 0.0
        %1112 = vmatpush1.msra.mxu0 0.0
        %1113 = vmatprep.subr.mxu0 0.0
        %1114 = vmatpush1.msra.mxu0 0.0
        %1115 = vmatprep.subr.mxu0 0.0
        %1116 = vmatpush1.msra.mxu0 0.0
        %1117 = vmatprep.subr.mxu0 0.0
        %1118 = vmatpush1.msra.mxu0 0.0
        %1119 = vmatprep.subr.mxu0 0.0
        %1120 = vmatpush1.msra.mxu0 0.0
        %1121 = vmatprep.subr.mxu0 0.0
        %1122 = vmatpush1.msra.mxu0 0.0
        %1123 = vmatprep.subr.mxu0 0.0
        %1124 = vmatpush1.msra.mxu0 0.0
        %1125 = vmatprep.subr.mxu0 0.0
        %1126 = vmatpush1.msra.mxu0 0.0
        %1127 = vmatprep.subr.mxu0 0.0
        %1128 = vmatpush1.msra.mxu0 0.0
        %1129 = vmatprep.subr.mxu0 0.0
        %1130 = vmatpush1.msra.mxu0 0.0
        %1131 = vmatprep.subr.mxu0 0.0
        %1132 = vmatpush1.msra.mxu0 0.0
        %1133 = vmatprep.subr.mxu0 0.0
        %1134 = vmatpush1.msra.mxu0 0.0
        %1135 = vmatprep.subr.mxu0 0.0
        %1136 = vmatpush1.msra.mxu0 0.0
        %1137 = vmatprep.subr.mxu0 0.0
        %1138 = vmatpush1.msra.mxu0 0.0
        %1139 = vmatprep.subr.mxu0 0.0
        %1140 = vmatpush1.msra.mxu0 0.0
        %1141 = vmatprep.subr.mxu0 0.0
        %1142 = vmatpush1.msra.mxu0 0.0
        %1143 = vmatprep.subr.mxu0 0.0
        %1144 = vmatpush1.msra.mxu0 0.0
        %1145 = vmatprep.subr.mxu0 0.0
        %1146 = vmatpush1.msra.mxu0 0.0
        %1147 = vmatprep.mubr.f32.mxu0 0.0
        %1148 = vmatmul.mubr.f32.gmra.mrb[0].mxu0 %v987
        %v1149 = vpop.f32.mrb[0].mxu0
        %v1150 = vadd.f32 0.0, %v1149
        %v1151 = vpop.f32.mrb[0].mxu0
        %1152 = vmatprep.mubr.f32.mxu0 0.0
        %1153 = vmatmul.mubr.f32.gmra.mrb[0].mxu0 %v990
        %v1154 = vpop.f32.mrb[0].mxu0
        %v1155 = vadd.f32 0.0, %v1154
        %v1156 = vpop.f32.mrb[0].mxu0
        %1157 = vmatprep.mubr.f32.mxu0 0.0
        %1158 = vmatmul.mubr.f32.gmra.mrb[0].mxu0 %v993
        %v1159 = vpop.f32.mrb[0].mxu0
        %v1160 = vadd.f32 0.0, %v1159
        %v1161 = vpop.f32.mrb[0].mxu0
        %1162 = vmatprep.mubr.f32.mxu0 0.0
        %1163 = vmatmul.mubr.f32.gmra.mrb[0].mxu0 %v996
        %v1164 = vpop.f32.mrb[0].mxu0
        %v1165 = vadd.f32 0.0, %v1164
        %v1166 = vpop.f32.mrb[0].mxu0
        %1167 = vdwg.mxu0
        %1168 = vmatprep.subr.mxu0 0.0
        %1169 = vmatpush1.msra.mxu0 %v973
        %1170 = vmatprep.subr.mxu0 0.0
        %1171 = vmatpush1.msra.mxu0 %v974
        %1172 = vmatprep.subr.mxu0 0.0
        %1173 = vmatpush1.msra.mxu0 %v981
        %1174 = vmatprep.subr.mxu0 0.0
        %1175 = vmatpush1.msra.mxu0 %v982
        %1176 = vmatprep.subr.mxu0 0.0
        %1177 = vmatpush1.msra.mxu0 0.0
        %1178 = vmatprep.subr.mxu0 0.0
        %1179 = vmatpush1.msra.mxu0 0.0
        %1180 = vmatprep.subr.mxu0 0.0
        %1181 = vmatpush1.msra.mxu0 0.0
        %1182 = vmatprep.subr.mxu0 0.0
        %1183 = vmatpush1.msra.mxu0 0.0
        %1184 = vmatprep.subr.mxu0 0.0
        %1185 = vmatpush1.msra.mxu0 0.0
        %1186 = vmatprep.subr.mxu0 0.0
        %1187 = vmatpush1.msra.mxu0 0.0
        %1188 = vmatprep.subr.mxu0 0.0
        %1189 = vmatpush1.msra.mxu0 0.0
        %1190 = vmatprep.subr.mxu0 0.0
        %1191 = vmatpush1.msra.mxu0 0.0
        %1192 = vmatprep.subr.mxu0 0.0
        %1193 = vmatpush1.msra.mxu0 0.0
        %1194 = vmatprep.subr.mxu0 0.0
        %1195 = vmatpush1.msra.mxu0 0.0
        %1196 = vmatprep.subr.mxu0 0.0
        %1197 = vmatpush1.msra.mxu0 0.0
        %1198 = vmatprep.subr.mxu0 0.0
        %1199 = vmatpush1.msra.mxu0 0.0
        %1200 = vmatprep.subr.mxu0 0.0
        %1201 = vmatpush1.msra.mxu0 0.0
        %1202 = vmatprep.subr.mxu0 0.0
        %1203 = vmatpush1.msra.mxu0 0.0
        %1204 = vmatprep.subr.mxu0 0.0
        %1205 = vmatpush1.msra.mxu0 0.0
        %1206 = vmatprep.subr.mxu0 0.0
        %1207 = vmatpush1.msra.mxu0 0.0
        %1208 = vmatprep.subr.mxu0 0.0
        %1209 = vmatpush1.msra.mxu0 0.0
        %1210 = vmatprep.subr.mxu0 0.0
        %1211 = vmatpush1.msra.mxu0 0.0
        %1212 = vmatprep.subr.mxu0 0.0
        %1213 = vmatpush1.msra.mxu0 0.0
        %1214 = vmatprep.subr.mxu0 0.0
        %1215 = vmatpush1.msra.mxu0 0.0
        %1216 = vmatprep.subr.mxu0 0.0
        %1217 = vmatpush1.msra.mxu0 0.0
        %1218 = vmatprep.subr.mxu0 0.0
        %1219 = vmatpush1.msra.mxu0 0.0
        %1220 = vmatprep.subr.mxu0 0.0
        %1221 = vmatpush1.msra.mxu0 0.0
        %1222 = vmatprep.subr.mxu0 0.0
        %1223 = vmatpush1.msra.mxu0 0.0
        %1224 = vmatprep.subr.mxu0 0.0
        %1225 = vmatpush1.msra.mxu0 0.0
        %1226 = vmatprep.subr.mxu0 0.0
        %1227 = vmatpush1.msra.mxu0 0.0
        %1228 = vmatprep.subr.mxu0 0.0
        %1229 = vmatpush1.msra.mxu0 0.0
        %1230 = vmatprep.subr.mxu0 0.0
        %1231 = vmatpush1.msra.mxu0 0.0
        %1232 = vmatprep.mubr.f32.mxu0 0.0
        %1233 = vmatmul.mubr.f32.gmra.mrb[0].mxu0 %v987
        %v1234 = vpop.f32.mrb[0].mxu0
        %v1235 = vadd.f32 0.0, %v1234
        %v1236 = vpop.f32.mrb[0].mxu0
        %1237 = vmatprep.mubr.f32.mxu0 0.0
        %1238 = vmatmul.mubr.f32.gmra.mrb[0].mxu0 %v990
        %v1239 = vpop.f32.mrb[0].mxu0
        %v1240 = vadd.f32 0.0, %v1239
        %v1241 = vpop.f32.mrb[0].mxu0
        %1242 = vmatprep.mubr.f32.mxu0 0.0
        %1243 = vmatmul.mubr.f32.gmra.mrb[0].mxu0 %v993
        %v1244 = vpop.f32.mrb[0].mxu0
        %v1245 = vadd.f32 0.0, %v1244
        %v1246 = vpop.f32.mrb[0].mxu0
        %1247 = vmatprep.mubr.f32.mxu0 0.0
        %1248 = vmatmul.mubr.f32.gmra.mrb[0].mxu0 %v996
        %v1249 = vpop.f32.mrb[0].mxu0
        %v1250 = vadd.f32 0.0, %v1249
        %v1251 = vpop.f32.mrb[0].mxu0
        %1252 = vdwg.mxu0
        %1253 = vmatprep.subr.mxu0 0.0
        %1254 = vmatpush1.msra.mxu0 %v975
        %1255 = vmatprep.subr.mxu0 0.0
        %1256 = vmatpush1.msra.mxu0 %v976
        %1257 = vmatprep.subr.mxu0 0.0
        %1258 = vmatpush1.msra.mxu0 %v983
        %1259 = vmatprep.subr.mxu0 0.0
        %1260 = vmatpush1.msra.mxu0 %v984
        %1261 = vmatprep.subr.mxu0 0.0
        %1262 = vmatpush1.msra.mxu0 0.0
        %1263 = vmatprep.subr.mxu0 0.0
        %1264 = vmatpush1.msra.mxu0 0.0
        %1265 = vmatprep.subr.mxu0 0.0
        %1266 = vmatpush1.msra.mxu0 0.0
        %1267 = vmatprep.subr.mxu0 0.0
        %1268 = vmatpush1.msra.mxu0 0.0
        %1269 = vmatprep.subr.mxu0 0.0
        %1270 = vmatpush1.msra.mxu0 0.0
        %1271 = vmatprep.subr.mxu0 0.0
        %1272 = vmatpush1.msra.mxu0 0.0
        %1273 = vmatprep.subr.mxu0 0.0
        %1274 = vmatpush1.msra.mxu0 0.0
        %1275 = vmatprep.subr.mxu0 0.0
        %1276 = vmatpush1.msra.mxu0 0.0
        %1277 = vmatprep.subr.mxu0 0.0
        %1278 = vmatpush1.msra.mxu0 0.0
        %1279 = vmatprep.subr.mxu0 0.0
        %1280 = vmatpush1.msra.mxu0 0.0
        %1281 = vmatprep.subr.mxu0 0.0
        %1282 = vmatpush1.msra.mxu0 0.0
        %1283 = vmatprep.subr.mxu0 0.0
        %1284 = vmatpush1.msra.mxu0 0.0
        %1285 = vmatprep.subr.mxu0 0.0
        %1286 = vmatpush1.msra.mxu0 0.0
        %1287 = vmatprep.subr.mxu0 0.0
        %1288 = vmatpush1.msra.mxu0 0.0
        %1289 = vmatprep.subr.mxu0 0.0
        %1290 = vmatpush1.msra.mxu0 0.0
        %1291 = vmatprep.subr.mxu0 0.0
        %1292 = vmatpush1.msra.mxu0 0.0
        %1293 = vmatprep.subr.mxu0 0.0
        %1294 = vmatpush1.msra.mxu0 0.0
        %1295 = vmatprep.subr.mxu0 0.0
        %1296 = vmatpush1.msra.mxu0 0.0
        %1297 = vmatprep.subr.mxu0 0.0
        %1298 = vmatpush1.msra.mxu0 0.0
        %1299 = vmatprep.subr.mxu0 0.0
        %1300 = vmatpush1.msra.mxu0 0.0
        %1301 = vmatprep.subr.mxu0 0.0
        %1302 = vmatpush1.msra.mxu0 0.0
        %1303 = vmatprep.subr.mxu0 0.0
        %1304 = vmatpush1.msra.mxu0 0.0
        %1305 = vmatprep.subr.mxu0 0.0
        %1306 = vmatpush1.msra.mxu0 0.0
        %1307 = vmatprep.subr.mxu0 0.0
        %1308 = vmatpush1.msra.mxu0 0.0
        %1309 = vmatprep.subr.mxu0 0.0
        %1310 = vmatpush1.msra.mxu0 0.0
        %1311 = vmatprep.subr.mxu0 0.0
        %1312 = vmatpush1.msra.mxu0 0.0
        %1313 = vmatprep.subr.mxu0 0.0
        %1314 = vmatpush1.msra.mxu0 0.0
        %1315 = vmatprep.subr.mxu0 0.0
        %1316 = vmatpush1.msra.mxu0 0.0
        %1317 = vmatprep.mubr.f32.mxu0 0.0
        %1318 = vmatmul.mubr.f32.gmra.mrb[0].mxu0 %v987
        %v1319 = vpop.f32.mrb[0].mxu0
        %v1320 = vadd.f32 0.0, %v1319
        %v1321 = vpop.f32.mrb[0].mxu0
        %1322 = vmatprep.mubr.f32.mxu0 0.0
        %1323 = vmatmul.mubr.f32.gmra.mrb[0].mxu0 %v990
        %v1324 = vpop.f32.mrb[0].mxu0
        %v1325 = vadd.f32 0.0, %v1324
        %v1326 = vpop.f32.mrb[0].mxu0
        %1327 = vmatprep.mubr.f32.mxu0 0.0
        %1328 = vmatmul.mubr.f32.gmra.mrb[0].mxu0 %v993
        %v1329 = vpop.f32.mrb[0].mxu0
        %v1330 = vadd.f32 0.0, %v1329
        %v1331 = vpop.f32.mrb[0].mxu0
        %1332 = vmatprep.mubr.f32.mxu0 0.0
        %1333 = vmatmul.mubr.f32.gmra.mrb[0].mxu0 %v996
        %v1334 = vpop.f32.mrb[0].mxu0
        %v1335 = vadd.f32 0.0, %v1334
        %v1336 = vpop.f32.mrb[0].mxu0
        %1337 = vdwg.mxu0
        %v1339 = vsel %vm343, %v1065, 0
        %v1342 = vsel %vm343, %v1070, 0
        %v1345 = vsel %vm343, %v1075, 0
        %v1348 = vsel %vm343, %v1080, 0
        %v1351 = vsel %vm343, %v1150, 0
        %v1354 = vsel %vm343, %v1155, 0
        %v1357 = vsel %vm343, %v1160, 0
        %v1360 = vsel %vm343, %v1165, 0
        %v1363 = vsel %vm343, %v1235, 0
        %v1366 = vsel %vm343, %v1240, 0
        %v1369 = vsel %vm343, %v1245, 0
        %v1372 = vsel %vm343, %v1250, 0
        %v1375 = vsel %vm343, %v1320, 0
        %v1378 = vsel %vm343, %v1325, 0
        %v1381 = vsel %vm343, %v1330, 0
        %v1384 = vsel %vm343, %v1335, 0
        %1386 = vmatprep.subr.mxu0 0.0
        %1387 = vmatpush1.msra.mxu0 %v341
        %1388 = vmatprep.subr.mxu0 0.0
        %1389 = vmatpush1.msra.mxu0 %v342
        %1390 = vmatprep.subr.mxu0 0.0
        %1391 = vmatpush1.msra.mxu0 0.0
        %1392 = vmatprep.subr.mxu0 0.0
        %1393 = vmatpush1.msra.mxu0 0.0
        %1394 = vmatprep.subr.mxu0 0.0
        %1395 = vmatpush1.msra.mxu0 0.0
        %1396 = vmatprep.subr.mxu0 0.0
        %1397 = vmatpush1.msra.mxu0 0.0
        %1398 = vmatprep.subr.mxu0 0.0
        %1399 = vmatpush1.msra.mxu0 0.0
        %1400 = vmatprep.subr.mxu0 0.0
        %1401 = vmatpush1.msra.mxu0 0.0
        %1402 = vmatprep.subr.mxu0 0.0
        %1403 = vmatpush1.msra.mxu0 0.0
        %1404 = vmatprep.subr.mxu0 0.0
        %1405 = vmatpush1.msra.mxu0 0.0
        %1406 = vmatprep.subr.mxu0 0.0
        %1407 = vmatpush1.msra.mxu0 0.0
        %1408 = vmatprep.subr.mxu0 0.0
        %1409 = vmatpush1.msra.mxu0 0.0
        %1410 = vmatprep.subr.mxu0 0.0
        %1411 = vmatpush1.msra.mxu0 0.0
        %1412 = vmatprep.subr.mxu0 0.0
        %1413 = vmatpush1.msra.mxu0 0.0
        %1414 = vmatprep.subr.mxu0 0.0
        %1415 = vmatpush1.msra.mxu0 0.0
        %1416 = vmatprep.subr.mxu0 0.0
        %1417 = vmatpush1.msra.mxu0 0.0
        %1418 = vmatprep.subr.mxu0 0.0
        %1419 = vmatpush1.msra.mxu0 0.0
        %1420 = vmatprep.subr.mxu0 0.0
        %1421 = vmatpush1.msra.mxu0 0.0
        %1422 = vmatprep.subr.mxu0 0.0
        %1423 = vmatpush1.msra.mxu0 0.0
        %1424 = vmatprep.subr.mxu0 0.0
        %1425 = vmatpush1.msra.mxu0 0.0
        %1426 = vmatprep.subr.mxu0 0.0
        %1427 = vmatpush1.msra.mxu0 0.0
        %1428 = vmatprep.subr.mxu0 0.0
        %1429 = vmatpush1.msra.mxu0 0.0
        %1430 = vmatprep.subr.mxu0 0.0
        %1431 = vmatpush1.msra.mxu0 0.0
        %1432 = vmatprep.subr.mxu0 0.0
        %1433 = vmatpush1.msra.mxu0 0.0
        %1434 = vmatprep.subr.mxu0 0.0
        %1435 = vmatpush1.msra.mxu0 0.0
        %1436 = vmatprep.subr.mxu0 0.0
        %1437 = vmatpush1.msra.mxu0 0.0
        %1438 = vmatprep.subr.mxu0 0.0
        %1439 = vmatpush1.msra.mxu0 0.0
        %1440 = vmatprep.subr.mxu0 0.0
        %1441 = vmatpush1.msra.mxu0 0.0
        %1442 = vmatprep.subr.mxu0 0.0
        %1443 = vmatpush1.msra.mxu0 0.0
        %1444 = vmatprep.subr.mxu0 0.0
        %1445 = vmatpush1.msra.mxu0 0.0
        %1446 = vmatprep.subr.mxu0 0.0
        %1447 = vmatpush1.msra.mxu0 0.0
        %1448 = vmatprep.subr.mxu0 0.0
        %1449 = vmatpush1.msra.mxu0 0.0
        %1450 = vmatprep.mubr.f32.mxu0 0.0
        %1451 = vmatmul.mubr.f32.gmra.mrb[0].mxu0 %v1339
        %v1452 = vpop.f32.mrb[0].mxu0
        %v1453 = vadd.f32 0.0, %v1452
        %v1454 = vpop.f32.mrb[0].mxu0
        %1455 = vmatprep.mubr.f32.mxu0 0.0
        %1456 = vmatmul.mubr.f32.gmra.mrb[0].mxu0 %v1342
        %v1457 = vpop.f32.mrb[0].mxu0
        %v1458 = vadd.f32 0.0, %v1457
        %v1459 = vpop.f32.mrb[0].mxu0
        %1460 = vmatprep.mubr.f32.mxu0 0.0
        %1461 = vmatmul.mubr.f32.gmra.mrb[0].mxu0 %v1345
        %v1462 = vpop.f32.mrb[0].mxu0
        %v1463 = vadd.f32 0.0, %v1462
        %v1464 = vpop.f32.mrb[0].mxu0
        %1465 = vmatprep.mubr.f32.mxu0 0.0
        %1466 = vmatmul.mubr.f32.gmra.mrb[0].mxu0 %v1348
        %v1467 = vpop.f32.mrb[0].mxu0
        %v1468 = vadd.f32 0.0, %v1467
        %v1469 = vpop.f32.mrb[0].mxu0
        %1470 = vmatprep.mubr.f32.mxu0 0.0
        %1471 = vmatmul.mubr.f32.gmra.mrb[0].mxu0 %v1351
        %v1472 = vpop.f32.mrb[0].mxu0
        %v1473 = vadd.f32 0.0, %v1472
        %v1474 = vpop.f32.mrb[0].mxu0
        %1475 = vmatprep.mubr.f32.mxu0 0.0
        %1476 = vmatmul.mubr.f32.gmra.mrb[0].mxu0 %v1354
        %v1477 = vpop.f32.mrb[0].mxu0
        %v1478 = vadd.f32 0.0, %v1477
        %v1479 = vpop.f32.mrb[0].mxu0
        %1480 = vmatprep.mubr.f32.mxu0 0.0
        %1481 = vmatmul.mubr.f32.gmra.mrb[0].mxu0 %v1357
        %v1482 = vpop.f32.mrb[0].mxu0
        %v1483 = vadd.f32 0.0, %v1482
        %v1484 = vpop.f32.mrb[0].mxu0
        %1485 = vmatprep.mubr.f32.mxu0 0.0
        %1486 = vmatmul.mubr.f32.gmra.mrb[0].mxu0 %v1360
        %v1487 = vpop.f32.mrb[0].mxu0
        %v1488 = vadd.f32 0.0, %v1487
        %v1489 = vpop.f32.mrb[0].mxu0
        %1490 = vmatprep.mubr.f32.mxu0 0.0
        %1491 = vmatmul.mubr.f32.gmra.mrb[0].mxu0 %v1363
        %v1492 = vpop.f32.mrb[0].mxu0
        %v1493 = vadd.f32 0.0, %v1492
        %v1494 = vpop.f32.mrb[0].mxu0
        %1495 = vmatprep.mubr.f32.mxu0 0.0
        %1496 = vmatmul.mubr.f32.gmra.mrb[0].mxu0 %v1366
        %v1497 = vpop.f32.mrb[0].mxu0
        %v1498 = vadd.f32 0.0, %v1497
        %v1499 = vpop.f32.mrb[0].mxu0
        %1500 = vmatprep.mubr.f32.mxu0 0.0
        %1501 = vmatmul.mubr.f32.gmra.mrb[0].mxu0 %v1369
        %v1502 = vpop.f32.mrb[0].mxu0
        %v1503 = vadd.f32 0.0, %v1502
        %v1504 = vpop.f32.mrb[0].mxu0
        %1505 = vmatprep.mubr.f32.mxu0 0.0
        %1506 = vmatmul.mubr.f32.gmra.mrb[0].mxu0 %v1372
        %v1507 = vpop.f32.mrb[0].mxu0
        %v1508 = vadd.f32 0.0, %v1507
        %v1509 = vpop.f32.mrb[0].mxu0
        %1510 = vmatprep.mubr.f32.mxu0 0.0
        %1511 = vmatmul.mubr.f32.gmra.mrb[0].mxu0 %v1375
        %v1512 = vpop.f32.mrb[0].mxu0
        %v1513 = vadd.f32 0.0, %v1512
        %v1514 = vpop.f32.mrb[0].mxu0
        %1515 = vmatprep.mubr.f32.mxu0 0.0
        %1516 = vmatmul.mubr.f32.gmra.mrb[0].mxu0 %v1378
        %v1517 = vpop.f32.mrb[0].mxu0
        %v1518 = vadd.f32 0.0, %v1517
        %v1519 = vpop.f32.mrb[0].mxu0
        %1520 = vmatprep.mubr.f32.mxu0 0.0
        %1521 = vmatmul.mubr.f32.gmra.mrb[0].mxu0 %v1381
        %v1522 = vpop.f32.mrb[0].mxu0
        %v1523 = vadd.f32 0.0, %v1522
        %v1524 = vpop.f32.mrb[0].mxu0
        %1525 = vmatprep.mubr.f32.mxu0 0.0
        %1526 = vmatmul.mubr.f32.gmra.mrb[0].mxu0 %v1384
        %v1527 = vpop.f32.mrb[0].mxu0
        %v1528 = vadd.f32 0.0, %v1527
        %v1529 = vpop.f32.mrb[0].mxu0
        %1530 = vdwg.mxu0
        %1539 = vrot.lane.b32.xlu0 %v1463, 112
        %v1540 = vpop.permute.xlu0 %1539
        %1541 = vrot.lane.b32.xlu0 %v1468, 112
        %v1542 = vpop.permute.xlu0 %1541
        %1543 = vrot.lane.b32.xlu0 %v1483, 112
        %v1544 = vpop.permute.xlu0 %1543
        %1545 = vrot.lane.b32.xlu0 %v1488, 112
        %v1546 = vpop.permute.xlu0 %1545
        %1547 = vrot.lane.b32.xlu0 %v1503, 112
        %v1548 = vpop.permute.xlu0 %1547
        %1549 = vrot.lane.b32.xlu0 %v1508, 112
        %v1550 = vpop.permute.xlu0 %1549
        %1551 = vrot.lane.b32.xlu0 %v1523, 112
        %v1552 = vpop.permute.xlu0 %1551
        %1553 = vrot.lane.b32.xlu0 %v1528, 112
        %v1554 = vpop.permute.xlu0 %1553
        %v1563 = vsub.f32 %v1453, %v1540
        %v1564 = vsub.f32 %v1458, %v1542
        %v1565 = vsub.f32 %v1473, %v1544
        %v1566 = vsub.f32 %v1478, %v1546
        %v1567 = vsub.f32 %v1493, %v1548
        %v1568 = vsub.f32 %v1498, %v1550
        %v1569 = vsub.f32 %v1513, %v1552
        %v1570 = vsub.f32 %v1518, %v1554
        %1571 = vrot.lane.b32.xlu0 %v1463, 16
        %v1572 = vpop.permute.xlu0 %1571
        %1573 = vrot.lane.b32.xlu0 %v1468, 16
        %v1574 = vpop.permute.xlu0 %1573
        %1575 = vrot.lane.b32.xlu0 %v1483, 16
        %v1576 = vpop.permute.xlu0 %1575
        %1577 = vrot.lane.b32.xlu0 %v1488, 16
        %v1578 = vpop.permute.xlu0 %1577
        %1579 = vrot.lane.b32.xlu0 %v1503, 16
        %v1580 = vpop.permute.xlu0 %1579
        %1581 = vrot.lane.b32.xlu0 %v1508, 16
        %v1582 = vpop.permute.xlu0 %1581
        %1583 = vrot.lane.b32.xlu0 %v1523, 16
        %v1584 = vpop.permute.xlu0 %1583
        %1585 = vrot.lane.b32.xlu0 %v1528, 16
        %v1586 = vpop.permute.xlu0 %1585
        %v1595 = vadd.f32 %v1453, %v1572
        %v1596 = vadd.f32 %v1458, %v1574
        %v1597 = vadd.f32 %v1473, %v1576
        %v1598 = vadd.f32 %v1478, %v1578
        %v1599 = vadd.f32 %v1493, %v1580
        %v1600 = vadd.f32 %v1498, %v1582
        %v1601 = vadd.f32 %v1513, %v1584
        %v1602 = vadd.f32 %v1518, %v1586
        %v1603 = vmul.f32 %v1563, %v1563
        %v1604 = vmul.f32 %v1564, %v1564
        %v1605 = vmul.f32 %v1565, %v1565
        %v1606 = vmul.f32 %v1566, %v1566
        %v1607 = vmul.f32 %v1567, %v1567
        %v1608 = vmul.f32 %v1568, %v1568
        %v1609 = vmul.f32 %v1569, %v1569
        %v1610 = vmul.f32 %v1570, %v1570
        %v1611 = vmul.f32 %v1595, %v1595
        %v1612 = vmul.f32 %v1596, %v1596
        %v1613 = vmul.f32 %v1597, %v1597
        %v1614 = vmul.f32 %v1598, %v1598
        %v1615 = vmul.f32 %v1599, %v1599
        %v1616 = vmul.f32 %v1600, %v1600
        %v1617 = vmul.f32 %v1601, %v1601
        %v1618 = vmul.f32 %v1602, %v1602
        %1627 = vrot.lane.b32.xlu0 %v1611, 112
        %v1628 = vpop.permute.xlu0 %1627
        %1629 = vrot.lane.b32.xlu0 %v1612, 112
        %v1630 = vpop.permute.xlu0 %1629
        %1631 = vrot.lane.b32.xlu0 %v1613, 112
        %v1632 = vpop.permute.xlu0 %1631
        %1633 = vrot.lane.b32.xlu0 %v1614, 112
        %v1634 = vpop.permute.xlu0 %1633
        %1635 = vrot.lane.b32.xlu0 %v1615, 112
        %v1636 = vpop.permute.xlu0 %1635
        %1637 = vrot.lane.b32.xlu0 %v1616, 112
        %v1638 = vpop.permute.xlu0 %1637
        %1639 = vrot.lane.b32.xlu0 %v1617, 112
        %v1640 = vpop.permute.xlu0 %1639
        %1641 = vrot.lane.b32.xlu0 %v1618, 112
        %v1642 = vpop.permute.xlu0 %1641
        %v1651 = vadd.f32 %v1603, %v1628
        %v1652 = vadd.f32 %v1604, %v1630
        %v1653 = vadd.f32 %v1605, %v1632
        %v1654 = vadd.f32 %v1606, %v1634
        %v1655 = vadd.f32 %v1607, %v1636
        %v1656 = vadd.f32 %v1608, %v1638
        %v1657 = vadd.f32 %v1609, %v1640
        %v1658 = vadd.f32 %v1610, %v1642
        %v1659 = vrsqrt.pop %v1651
        %v1660 = vmul.f32 %v1651, %v1659
        %vm1661 = vcmp.eq.f32.partialorder %v1651, inf
        %v1662 = vsel %vm1661, %v1651, %v1660
        %vm1663 = vcmp.eq.f32.partialorder %v1651, 0.0
        %v1664 = vand.u32 %v1651, 2147483648
        %v1665 = vsel %vm1663, %v1664, %v1662
        %v1666 = vrsqrt.pop %v1652
        %v1667 = vmul.f32 %v1652, %v1666
        %vm1668 = vcmp.eq.f32.partialorder %v1652, inf
        %v1669 = vsel %vm1668, %v1652, %v1667
        %vm1670 = vcmp.eq.f32.partialorder %v1652, 0.0
        %v1671 = vand.u32 %v1652, 2147483648
        %v1672 = vsel %vm1670, %v1671, %v1669
        %v1673 = vrsqrt.pop %v1653
        %v1674 = vmul.f32 %v1653, %v1673
        %vm1675 = vcmp.eq.f32.partialorder %v1653, inf
        %v1676 = vsel %vm1675, %v1653, %v1674
        %vm1677 = vcmp.eq.f32.partialorder %v1653, 0.0
        %v1678 = vand.u32 %v1653, 2147483648
        %v1679 = vsel %vm1677, %v1678, %v1676
        %v1680 = vrsqrt.pop %v1654
        %v1681 = vmul.f32 %v1654, %v1680
        %vm1682 = vcmp.eq.f32.partialorder %v1654, inf
        %v1683 = vsel %vm1682, %v1654, %v1681
        %vm1684 = vcmp.eq.f32.partialorder %v1654, 0.0
        %v1685 = vand.u32 %v1654, 2147483648
        %v1686 = vsel %vm1684, %v1685, %v1683
        %v1687 = vrsqrt.pop %v1655
        %v1688 = vmul.f32 %v1655, %v1687
        %vm1689 = vcmp.eq.f32.partialorder %v1655, inf
        %v1690 = vsel %vm1689, %v1655, %v1688
        %vm1691 = vcmp.eq.f32.partialorder %v1655, 0.0
        %v1692 = vand.u32 %v1655, 2147483648
        %v1693 = vsel %vm1691, %v1692, %v1690
        %v1694 = vrsqrt.pop %v1656
        %v1695 = vmul.f32 %v1656, %v1694
        %vm1696 = vcmp.eq.f32.partialorder %v1656, inf
        %v1697 = vsel %vm1696, %v1656, %v1695
        %vm1698 = vcmp.eq.f32.partialorder %v1656, 0.0
        %v1699 = vand.u32 %v1656, 2147483648
        %v1700 = vsel %vm1698, %v1699, %v1697
        %v1701 = vrsqrt.pop %v1657
        %v1702 = vmul.f32 %v1657, %v1701
        %vm1703 = vcmp.eq.f32.partialorder %v1657, inf
        %v1704 = vsel %vm1703, %v1657, %v1702
        %vm1705 = vcmp.eq.f32.partialorder %v1657, 0.0
        %v1706 = vand.u32 %v1657, 2147483648
        %v1707 = vsel %vm1705, %v1706, %v1704
        %v1708 = vrsqrt.pop %v1658
        %v1709 = vmul.f32 %v1658, %v1708
        %vm1710 = vcmp.eq.f32.partialorder %v1658, inf
        %v1711 = vsel %vm1710, %v1658, %v1709
        %vm1712 = vcmp.eq.f32.partialorder %v1658, 0.0
        %v1713 = vand.u32 %v1658, 2147483648
        %v1714 = vsel %vm1712, %v1713, %v1711
        %1723 = vrot.lane.b32.xlu0 %v977, 16
        %v1724 = vpop.permute.xlu0 %1723
        %1725 = vrot.lane.b32.xlu0 %v978, 16
        %v1726 = vpop.permute.xlu0 %1725
        %1727 = vrot.lane.b32.xlu0 %v979, 16
        %v1728 = vpop.permute.xlu0 %1727
        %1729 = vrot.lane.b32.xlu0 %v980, 16
        %v1730 = vpop.permute.xlu0 %1729
        %1731 = vrot.lane.b32.xlu0 %v981, 16
        %v1732 = vpop.permute.xlu0 %1731
        %1733 = vrot.lane.b32.xlu0 %v982, 16
        %v1734 = vpop.permute.xlu0 %1733
        %1735 = vrot.lane.b32.xlu0 %v983, 16
        %v1736 = vpop.permute.xlu0 %1735
        %1737 = vrot.lane.b32.xlu0 %v984, 16
        %v1738 = vpop.permute.xlu0 %1737
        %1755 = vrot.lane.b32.xlu0 %v1563, 32
        %v1756 = vpop.permute.xlu0 %1755
        %1757 = vrot.lane.b32.xlu0 %v1564, 32
        %v1758 = vpop.permute.xlu0 %1757
        %1759 = vrot.lane.b32.xlu0 %v1565, 32
        %v1760 = vpop.permute.xlu0 %1759
        %1761 = vrot.lane.b32.xlu0 %v1566, 32
        %v1762 = vpop.permute.xlu0 %1761
        %1763 = vrot.lane.b32.xlu0 %v1567, 32
        %v1764 = vpop.permute.xlu0 %1763
        %1765 = vrot.lane.b32.xlu0 %v1568, 32
        %v1766 = vpop.permute.xlu0 %1765
        %1767 = vrot.lane.b32.xlu0 %v1569, 32
        %v1768 = vpop.permute.xlu0 %1767
        %1769 = vrot.lane.b32.xlu0 %v1570, 32
        %v1770 = vpop.permute.xlu0 %1769
        %1787 = vrot.lane.b32.xlu0 %v1595, 32
        %v1788 = vpop.permute.xlu0 %1787
        %1789 = vrot.lane.b32.xlu0 %v1596, 32
        %v1790 = vpop.permute.xlu0 %1789
        %1791 = vrot.lane.b32.xlu0 %v1597, 32
        %v1792 = vpop.permute.xlu0 %1791
        %1793 = vrot.lane.b32.xlu0 %v1598, 32
        %v1794 = vpop.permute.xlu0 %1793
        %1795 = vrot.lane.b32.xlu0 %v1599, 32
        %v1796 = vpop.permute.xlu0 %1795
        %1797 = vrot.lane.b32.xlu0 %v1600, 32
        %v1798 = vpop.permute.xlu0 %1797
        %1799 = vrot.lane.b32.xlu0 %v1601, 32
        %v1800 = vpop.permute.xlu0 %1799
        %1801 = vrot.lane.b32.xlu0 %v1602, 32
        %v1802 = vpop.permute.xlu0 %1801
        %1819 = vrot.lane.b32.xlu0 %v1665, 64
        %v1820 = vpop.permute.xlu0 %1819
        %1821 = vrot.lane.b32.xlu0 %v1672, 64
        %v1822 = vpop.permute.xlu0 %1821
        %1823 = vrot.lane.b32.xlu0 %v1679, 64
        %v1824 = vpop.permute.xlu0 %1823
        %1825 = vrot.lane.b32.xlu0 %v1686, 64
        %v1826 = vpop.permute.xlu0 %1825
        %1827 = vrot.lane.b32.xlu0 %v1693, 64
        %v1828 = vpop.permute.xlu0 %1827
        %1829 = vrot.lane.b32.xlu0 %v1700, 64
        %v1830 = vpop.permute.xlu0 %1829
        %1831 = vrot.lane.b32.xlu0 %v1707, 64
        %v1832 = vpop.permute.xlu0 %1831
        %1833 = vrot.lane.b32.xlu0 %v1714, 64
        %v1834 = vpop.permute.xlu0 %1833
        %v1843 = vsel %vm343, %v969, %v1724
        %v1844 = vsel %vm343, %v970, %v1726
        %v1845 = vsel %vm343, %v971, %v1728
        %v1846 = vsel %vm343, %v972, %v1730
        %v1847 = vsel %vm343, %v973, %v1732
        %v1848 = vsel %vm343, %v974, %v1734
        %v1849 = vsel %vm343, %v975, %v1736
        %v1850 = vsel %vm343, %v976, %v1738
        %v1851 = vsel %vm985, %v1843, %v1756
        %v1852 = vsel %vm985, %v1844, %v1758
        %v1853 = vsel %vm985, %v1845, %v1760
        %v1854 = vsel %vm985, %v1846, %v1762
        %v1855 = vsel %vm985, %v1847, %v1764
        %v1856 = vsel %vm985, %v1848, %v1766
        %v1857 = vsel %vm985, %v1849, %v1768
        %v1858 = vsel %vm985, %v1850, %v1770
        %vm1859 = vcmask 392192
        %v1860 = vsel %vm1859, %v1851, %v1788
        %v1861 = vsel %vm1859, %v1852, %v1790
        %v1862 = vsel %vm1859, %v1853, %v1792
        %v1863 = vsel %vm1859, %v1854, %v1794
        %v1864 = vsel %vm1859, %v1855, %v1796
        %v1865 = vsel %vm1859, %v1856, %v1798
        %v1866 = vsel %vm1859, %v1857, %v1800
        %v1867 = vsel %vm1859, %v1858, %v1802
        %vm1868 = vcmask 523264
        %v1869 = vsel %vm1868, %v1860, %v1820
        %v1870 = vsel %vm1868, %v1861, %v1822
        %v1871 = vsel %vm1868, %v1862, %v1824
        %v1872 = vsel %vm1868, %v1863, %v1826
        %v1873 = vsel %vm1868, %v1864, %v1828
        %v1874 = vsel %vm1868, %v1865, %v1830
        %v1875 = vsel %vm1868, %v1866, %v1832
        %v1876 = vsel %vm1868, %v1867, %v1834
        %vm1877 = vcmask 654336
        %v1878 = vsel %vm1877, %v1869, 0.0
        %v1879 = vsel %vm1877, %v1870, 0.0
        %v1880 = vsel %vm1877, %v1871, 0.0
        %v1881 = vsel %vm1877, %v1872, 0.0
        %v1882 = vsel %vm1877, %v1873, 0.0
        %v1883 = vsel %vm1877, %v1874, 0.0
        %v1884 = vsel %vm1877, %v1875, 0.0
        %v1885 = vsel %vm1877, %v1876, 0.0
        %1886 = vst [vmem:[%s311] sm:$0xff] %v1878
        %1887 = vst [vmem:[%s311 + $0x8] sm:$0xff] %v1879
        %1888 = vst [vmem:[%s311 + $0x10] sm:$0xff] %v1880
        %1889 = vst [vmem:[%s311 + $0x18] sm:$0xff] %v1881
        %1890 = vst [vmem:[%s311 + $0x20] sm:$0xff] %v1882
        %1891 = vst [vmem:[%s311 + $0x28] sm:$0xff] %v1883
        %1892 = vst [vmem:[%s311 + $0x30] sm:$0xff] %v1884
        %1893 = vst [vmem:[%s311 + $0x38] sm:$0xff] %v1885
        %s1894 = sand.u32 %s170, 1
        %s1895 = scalar_lea.sflag [#allocation4], %s1894
        %s1896 = sand.u32 %s170, 1
        %s1897 = smul.addr %s1896, 64
        %s1898 = scalar_lea.vmem [#allocation7], %s1897
        // Predicated region
        $region53: #{tpu_custom_call.1} parent=43 // pred_check
          %p1899 = pneg %p180
        $region54: #{tpu_custom_call.1} parent=43 // pred_check_branch
          %1901 = sbr.rel (%p1899) target = $region56
        $region55: #{tpu_custom_call.1} parent=43 // pred_region
          %s1902 = smul.u32 8, %s26
          %s1904 = ssub.s32 1024, 1024
          %1905 = vsyncadd %s1895, %s1904
          %s1906 = smul.addr %s1902, 128
          %s1907 = scalar_lea.hbm %s6, %s1906
          %s1908 = sshll.u32 %s1898, 4
          %s1909 = int_to_ptr.vmem [resolvable:$true] %s1908
          %1914 = dma.vmem_to_hbm [thread:$0]  %s1909, 1024, %s1907, %s1895, 128, 128, 8
        $region56: #{tpu_custom_call.1} parent=43 // pred_fallthru
          _
      $region44: #{tpu_custom_call.1} parent=5 // pred_fallthru
        _
      %p1915 = scmp.le.s32.totalorder 2, %s21
      // Predicated region
      $region57: #{tpu_custom_call.1} parent=5 // pred_check
        %p1916 = pneg %p1915
      $region58: #{tpu_custom_call.1} parent=5 // pred_check_branch
        %1918 = sbr.rel (%p1916) target = $region60
      $region59: #{tpu_custom_call.1} parent=5 // pred_region
        %s1919 = ssub.s32 %s21, 2
        // Predicated region
        $region61: #{tpu_custom_call.1} parent=59 // pred_check
          %p1920 = pneg %p186
        $region62: #{tpu_custom_call.1} parent=59 // pred_check_branch
          %1922 = sbr.rel (%p1920) target = $region64
        $region63: #{tpu_custom_call.1} parent=59 // pred_region
          %s1923 = sand.u32 %s171, 1
          %s1924 = scalar_lea.sflag [#allocation4], %s1923
          %s1925 = sand.u32 %s171, 1
          %s1926 = smul.addr %s1925, 64
          %s1927 = scalar_lea.vmem [#allocation7], %s1926
          %1928 = dma.done %s1924, 1024
        $region64: #{tpu_custom_call.1} parent=59 // pred_fallthru
          _
      $region60: #{tpu_custom_call.1} parent=5 // pred_fallthru
        _
    $region6: #{tpu_custom_call.1} parent=1 // loop_footer
      %s25 = sadd.s32 1, %s21
    $region7: #{tpu_custom_call.1} parent=1 // loop_footer_branch
      %20 = sbr.rel target = $region3
    $region8: #{tpu_custom_call.1} parent=1 // loop_exit
      _
    %1929 = vsyncpa [#allocation3], 1
    %s1930 = scalar_lea.sflag [#allocation3], 1
    %1931 = vsyncpa %s1930, 1
    %1932 = vsyncpa [#allocation6], 1
    %s1933 = scalar_lea.sflag [#allocation6], 1
    %1934 = vsyncpa %s1933, 1
    %1935 = vsyncpa [#allocation4], 1
    %s1936 = scalar_lea.sflag [#allocation4], 1
    %1937 = vsyncpa %s1936, 1

</llo_original>
